<compile_context>
chip_gen: v5e
topology: v5e:2x2
jax: 0.10.0
libtpu: 0.0.40
codegen_flags: <defaults>
</compile_context>

<pallas_src>
import jax
import jax.numpy as jnp
from jax import lax
from jax.experimental import pallas as pl
from jax.experimental.pallas import tpu as pltpu


def _skip_kernel(x_ref, sh_ref, swt_ref, o_ref):
    """One batch element: zero-interleave upsample + crop via two MXU matmuls.

    x_ref:   (1, C, H, W)     input block (native NCHW layout)
    sh_ref:  (th, H)          height scatter matrix (0/1)
    swt_ref: (W, tw)          width scatter matrix (0/1), pre-transposed
    o_ref:   (1, C, th, tw)   output block
    """
    C = x_ref.shape[1]
    # Statically unrolled over channels (C is a small static int): two tiny
    # 2-D MXU dots per channel; slicing the leading dims of the block is free.
    for c in range(C):
        xc = x_ref[0, c]                                   # (H, W)
        # width scatter: b[h, j] = x[h, j // f] if j % f == 0 else 0
        bc = jnp.dot(xc, swt_ref[...],
                     preferred_element_type=jnp.float32,
                     precision=lax.Precision.HIGHEST)      # (H, tw)
        # height scatter: o[i, j] = b[i // f, j] if i % f == 0 else 0
        oc = jnp.dot(sh_ref[...], bc,
                     preferred_element_type=jnp.float32,
                     precision=lax.Precision.HIGHEST)      # (th, tw)
        o_ref[0, c] = oc.astype(o_ref.dtype)


def _scatter_matrix(target, size, factor, dtype):
    """S[i, s] = 1 iff i % factor == 0 and s == i // factor  (shape (target, size))."""
    i = jnp.arange(target)
    s = jnp.arange(size)
    return ((i % factor == 0)[:, None]
            & (s[None, :] == (i // factor)[:, None])).astype(dtype)


def skip_forward(x, target_height=32, target_width=32):
    """Pallas equivalent of Skip.forward. x: (N, C, H, W) NCHW."""
    N, C, H, W = x.shape
    if H >= target_height and W >= target_width:
        # Reference module returns the input unchanged (no crop, no copy).
        return x
    fh = (target_height + H - 1) // H
    fw = (target_width + W - 1) // W
    assert fh == fw, "smart_padding requires equal height/width upsample factors"
    f = fh
    th, tw = target_height, target_width

    sh = _scatter_matrix(th, H, f, x.dtype)        # (th, H)  height scatter
    swt = _scatter_matrix(tw, W, f, x.dtype).T     # (W, tw)  width scatter (transposed)

    itemsize = jnp.dtype(x.dtype).itemsize
    cost = pl.CostEstimate(
        flops=2 * N * C * tw * H * (W + th),
        transcendentals=0,
        bytes_accessed=(N * C * H * W + N * C * th * tw + th * H + W * tw) * itemsize,
    )

    out = pl.pallas_call(
        _skip_kernel,
        out_shape=jax.ShapeDtypeStruct((N, C, th, tw), x.dtype),
        grid=(N,),
        in_specs=[
            pl.BlockSpec((1, C, H, W), lambda n: (n, 0, 0, 0)),
            pl.BlockSpec((th, H), lambda n: (0, 0)),     # constant block: fetched once
            pl.BlockSpec((W, tw), lambda n: (0, 0)),     # constant block: fetched once
        ],
        out_specs=pl.BlockSpec((1, C, th, tw), lambda n: (n, 0, 0, 0)),
        compiler_params=pltpu.CompilerParams(
            dimension_semantics=("parallel",)),
        cost_estimate=cost,
    )(x, sh, swt)

    return out


def _skip_reference(x, target_height=32, target_width=32):
    """Pure-JAX mirror of the PyTorch smart_padding, for verification."""
    N, C, H, W = x.shape
    if H >= target_height and W >= target_width:
        return x
    f = (target_height + H - 1) // H
    xp = jnp.zeros((N, C, f * H, f * W), x.dtype)
    xp = xp.at[:, :, ::f, ::f].set(x)
    return xp[:, :, :target_height, :target_width]


if __name__ == "__main__":
    key = jax.random.PRNGKey(0)
    # NCHW input smaller than the (32, 32) target -> factor-2 zero-interleave path.
    x = jax.random.normal(key, (2, 4, 16, 16), jnp.float32)

    out = jax.jit(skip_forward)(x)
    out = jax.block_until_ready(out)

    expected = _skip_reference(x)
    assert out.shape == (2, 4, 32, 32)
    assert bool(jnp.all(jnp.isfinite(out)))
    assert bool(jnp.allclose(out, expected, atol=1e-5, rtol=1e-5))
    print("KERNEL_OK")
</pallas_src>

<mosaic_0001>
module attributes {stable_mosaic.version = 11 : i64} {
  func.func @_skip_kernel(%arg0: i32, %arg1: memref<1x4x16x16xf32, #tpu.memory_space<vmem>>, %arg2: memref<32x16xf32, #tpu.memory_space<vmem>>, %arg3: memref<16x32xf32, #tpu.memory_space<vmem>>, %arg4: memref<1x4x32x32xf32, #tpu.memory_space<vmem>>) attributes {dimension_semantics = [#tpu.dimension_semantics<parallel>], iteration_bounds = array<i64: 2>, scalar_prefetch = 0 : i64, scratch_operands = 0 : i64, tpu.core_type = #tpu.core_type<tc>, window_params = [{transform_indices = @transform_0, window_bounds = array<i64: 1, 4, 16, 16>}, {pipeline_mode = #tpu.pipeline_mode<synchronous>, transform_indices = @transform_1, window_bounds = array<i64: 32, 16>}, {pipeline_mode = #tpu.pipeline_mode<synchronous>, transform_indices = @transform_2, window_bounds = array<i64: 16, 32>}, {transform_indices = @transform_3, window_bounds = array<i64: 1, 4, 32, 32>}]} {
    %c0 = arith.constant 0 : index
    %c0_0 = arith.constant 0 : index
    %c0_1 = arith.constant 0 : index
    %c0_2 = arith.constant 0 : index
    %0 = vector.load %arg1[%c0, %c0_0, %c0_1, %c0_2] : memref<1x4x16x16xf32, #tpu.memory_space<vmem>>, vector<1x1x16x16xf32>
    %1 = vector.shape_cast %0 : vector<1x1x16x16xf32> to vector<16x16xf32>
    %c0_3 = arith.constant 0 : index
    %c0_4 = arith.constant 0 : index
    %2 = vector.load %arg3[%c0_3, %c0_4] : memref<16x32xf32, #tpu.memory_space<vmem>>, vector<16x32xf32>
    %cst = arith.constant dense<0.000000e+00> : vector<16x32xf32>
    %3 = tpu.matmul %1, %2, %cst {dimension_numbers = #tpu.dot_dimension_numbers<[1], [0], [0], [1], [0, 0, 1, 1], [], []>, precision = #tpu.contract_precision<fp32>} : vector<16x16xf32>, vector<16x32xf32>, vector<16x32xf32> -> vector<16x32xf32>
    %c0_5 = arith.constant 0 : index
    %c0_6 = arith.constant 0 : index
    %4 = vector.load %arg2[%c0_5, %c0_6] : memref<32x16xf32, #tpu.memory_space<vmem>>, vector<32x16xf32>
    %cst_7 = arith.constant dense<0.000000e+00> : vector<32x32xf32>
    %5 = tpu.matmul %4, %3, %cst_7 {dimension_numbers = #tpu.dot_dimension_numbers<[1], [0], [0], [1], [0, 0, 1, 1], [], []>, precision = #tpu.contract_precision<fp32>} : vector<32x16xf32>, vector<16x32xf32>, vector<32x32xf32> -> vector<32x32xf32>
    %c0_8 = arith.constant 0 : index
    %c0_9 = arith.constant 0 : index
    %c0_10 = arith.constant 0 : index
    %c0_11 = arith.constant 0 : index
    %6 = vector.load %arg4[%c0_8, %c0_9, %c0_10, %c0_11] : memref<1x4x32x32xf32, #tpu.memory_space<vmem>>, vector<1x1x32x32xf32>
    %7 = vector.shape_cast %6 : vector<1x1x32x32xf32> to vector<32x32xf32>
    %8 = vector.shape_cast %5 : vector<32x32xf32> to vector<1x1x32x32xf32>
    tpu.vector_store %arg4[%c0_8, %c0_9, %c0_10, %c0_11], %8 {strides = array<i32>} : memref<1x4x32x32xf32, #tpu.memory_space<vmem>>, vector<1x1x32x32xf32>,
    %c0_12 = arith.constant 0 : index
    %c1 = arith.constant 1 : index
    %c0_13 = arith.constant 0 : index
    %c0_14 = arith.constant 0 : index
    %9 = vector.load %arg1[%c0_12, %c1, %c0_13, %c0_14] : memref<1x4x16x16xf32, #tpu.memory_space<vmem>>, vector<1x1x16x16xf32>
    %10 = vector.shape_cast %9 : vector<1x1x16x16xf32> to vector<16x16xf32>
    %c0_15 = arith.constant 0 : index
    %c0_16 = arith.constant 0 : index
    %11 = vector.load %arg3[%c0_15, %c0_16] : memref<16x32xf32, #tpu.memory_space<vmem>>, vector<16x32xf32>
    %cst_17 = arith.constant dense<0.000000e+00> : vector<16x32xf32>
    %12 = tpu.matmul %10, %11, %cst_17 {dimension_numbers = #tpu.dot_dimension_numbers<[1], [0], [0], [1], [0, 0, 1, 1], [], []>, precision = #tpu.contract_precision<fp32>} : vector<16x16xf32>, vector<16x32xf32>, vector<16x32xf32> -> vector<16x32xf32>
    %c0_18 = arith.constant 0 : index
    %c0_19 = arith.constant 0 : index
    %13 = vector.load %arg2[%c0_18, %c0_19] : memref<32x16xf32, #tpu.memory_space<vmem>>, vector<32x16xf32>
    %cst_20 = arith.constant dense<0.000000e+00> : vector<32x32xf32>
    %14 = tpu.matmul %13, %12, %cst_20 {dimension_numbers = #tpu.dot_dimension_numbers<[1], [0], [0], [1], [0, 0, 1, 1], [], []>, precision = #tpu.contract_precision<fp32>} : vector<32x16xf32>, vector<16x32xf32>, vector<32x32xf32> -> vector<32x32xf32>
    %c0_21 = arith.constant 0 : index
    %c1_22 = arith.constant 1 : index
    %c0_23 = arith.constant 0 : index
    %c0_24 = arith.constant 0 : index
    %15 = vector.load %arg4[%c0_21, %c1_22, %c0_23, %c0_24] : memref<1x4x32x32xf32, #tpu.memory_space<vmem>>, vector<1x1x32x32xf32>
    %16 = vector.shape_cast %15 : vector<1x1x32x32xf32> to vector<32x32xf32>
    %17 = vector.shape_cast %14 : vector<32x32xf32> to vector<1x1x32x32xf32>
    tpu.vector_store %arg4[%c0_21, %c1_22, %c0_23, %c0_24], %17 {strides = array<i32>} : memref<1x4x32x32xf32, #tpu.memory_space<vmem>>, vector<1x1x32x32xf32>,
    %c0_25 = arith.constant 0 : index
    %c2 = arith.constant 2 : index
    %c0_26 = arith.constant 0 : index
    %c0_27 = arith.constant 0 : index
    %18 = vector.load %arg1[%c0_25, %c2, %c0_26, %c0_27] : memref<1x4x16x16xf32, #tpu.memory_space<vmem>>, vector<1x1x16x16xf32>
    %19 = vector.shape_cast %18 : vector<1x1x16x16xf32> to vector<16x16xf32>
    %c0_28 = arith.constant 0 : index
    %c0_29 = arith.constant 0 : index
    %20 = vector.load %arg3[%c0_28, %c0_29] : memref<16x32xf32, #tpu.memory_space<vmem>>, vector<16x32xf32>
    %cst_30 = arith.constant dense<0.000000e+00> : vector<16x32xf32>
    %21 = tpu.matmul %19, %20, %cst_30 {dimension_numbers = #tpu.dot_dimension_numbers<[1], [0], [0], [1], [0, 0, 1, 1], [], []>, precision = #tpu.contract_precision<fp32>} : vector<16x16xf32>, vector<16x32xf32>, vector<16x32xf32> -> vector<16x32xf32>
    %c0_31 = arith.constant 0 : index
    %c0_32 = arith.constant 0 : index
    %22 = vector.load %arg2[%c0_31, %c0_32] : memref<32x16xf32, #tpu.memory_space<vmem>>, vector<32x16xf32>
    %cst_33 = arith.constant dense<0.000000e+00> : vector<32x32xf32>
    %23 = tpu.matmul %22, %21, %cst_33 {dimension_numbers = #tpu.dot_dimension_numbers<[1], [0], [0], [1], [0, 0, 1, 1], [], []>, precision = #tpu.contract_precision<fp32>} : vector<32x16xf32>, vector<16x32xf32>, vector<32x32xf32> -> vector<32x32xf32>
    %c0_34 = arith.constant 0 : index
    %c2_35 = arith.constant 2 : index
    %c0_36 = arith.constant 0 : index
    %c0_37 = arith.constant 0 : index
    %24 = vector.load %arg4[%c0_34, %c2_35, %c0_36, %c0_37] : memref<1x4x32x32xf32, #tpu.memory_space<vmem>>, vector<1x1x32x32xf32>
    %25 = vector.shape_cast %24 : vector<1x1x32x32xf32> to vector<32x32xf32>
    %26 = vector.shape_cast %23 : vector<32x32xf32> to vector<1x1x32x32xf32>
    tpu.vector_store %arg4[%c0_34, %c2_35, %c0_36, %c0_37], %26 {strides = array<i32>} : memref<1x4x32x32xf32, #tpu.memory_space<vmem>>, vector<1x1x32x32xf32>,
    %c0_38 = arith.constant 0 : index
    %c3 = arith.constant 3 : index
    %c0_39 = arith.constant 0 : index
    %c0_40 = arith.constant 0 : index
    %27 = vector.load %arg1[%c0_38, %c3, %c0_39, %c0_40] : memref<1x4x16x16xf32, #tpu.memory_space<vmem>>, vector<1x1x16x16xf32>
    %28 = vector.shape_cast %27 : vector<1x1x16x16xf32> to vector<16x16xf32>
    %c0_41 = arith.constant 0 : index
    %c0_42 = arith.constant 0 : index
    %29 = vector.load %arg3[%c0_41, %c0_42] : memref<16x32xf32, #tpu.memory_space<vmem>>, vector<16x32xf32>
    %cst_43 = arith.constant dense<0.000000e+00> : vector<16x32xf32>
    %30 = tpu.matmul %28, %29, %cst_43 {dimension_numbers = #tpu.dot_dimension_numbers<[1], [0], [0], [1], [0, 0, 1, 1], [], []>, precision = #tpu.contract_precision<fp32>} : vector<16x16xf32>, vector<16x32xf32>, vector<16x32xf32> -> vector<16x32xf32>
    %c0_44 = arith.constant 0 : index
    %c0_45 = arith.constant 0 : index
    %31 = vector.load %arg2[%c0_44, %c0_45] : memref<32x16xf32, #tpu.memory_space<vmem>>, vector<32x16xf32>
    %cst_46 = arith.constant dense<0.000000e+00> : vector<32x32xf32>
    %32 = tpu.matmul %31, %30, %cst_46 {dimension_numbers = #tpu.dot_dimension_numbers<[1], [0], [0], [1], [0, 0, 1, 1], [], []>, precision = #tpu.contract_precision<fp32>} : vector<32x16xf32>, vector<16x32xf32>, vector<32x32xf32> -> vector<32x32xf32>
    %c0_47 = arith.constant 0 : index
    %c3_48 = arith.constant 3 : index
    %c0_49 = arith.constant 0 : index
    %c0_50 = arith.constant 0 : index
    %33 = vector.load %arg4[%c0_47, %c3_48, %c0_49, %c0_50] : memref<1x4x32x32xf32, #tpu.memory_space<vmem>>, vector<1x1x32x32xf32>
    %34 = vector.shape_cast %33 : vector<1x1x32x32xf32> to vector<32x32xf32>
    %35 = vector.shape_cast %32 : vector<32x32xf32> to vector<1x1x32x32xf32>
    tpu.vector_store %arg4[%c0_47, %c3_48, %c0_49, %c0_50], %35 {strides = array<i32>} : memref<1x4x32x32xf32, #tpu.memory_space<vmem>>, vector<1x1x32x32xf32>,
    return
  }
  func.func @transform_0(%arg0: i32) -> (i32, i32, i32, i32) {
    %c0_i32 = arith.constant 0 : i32
    %c0_i32_0 = arith.constant 0 : i32
    %c0_i32_1 = arith.constant 0 : i32
    %c0_i32_2 = arith.constant 0 : i32
    return %arg0, %c0_i32, %c0_i32_0, %c0_i32_1 : i32, i32, i32, i32
  }
  func.func @transform_1(%arg0: i32) -> (i32, i32) {
    %c0_i32 = arith.constant 0 : i32
    %c0_i32_0 = arith.constant 0 : i32
    %c0_i32_1 = arith.constant 0 : i32
    return %c0_i32, %c0_i32_0 : i32, i32
  }
  func.func @transform_2(%arg0: i32) -> (i32, i32) {
    %c0_i32 = arith.constant 0 : i32
    %c0_i32_0 = arith.constant 0 : i32
    %c0_i32_1 = arith.constant 0 : i32
    return %c0_i32, %c0_i32_0 : i32, i32
  }
  func.func @transform_3(%arg0: i32) -> (i32, i32, i32, i32) {
    %c0_i32 = arith.constant 0 : i32
    %c0_i32_0 = arith.constant 0 : i32
    %c0_i32_1 = arith.constant 0 : i32
    %c0_i32_2 = arith.constant 0 : i32
    return %arg0, %c0_i32, %c0_i32_0, %c0_i32_1 : i32, i32, i32, i32
  }
}

</mosaic_0001>

<llo_original>
// kernel: skip_forward.1
$region0: #{skip_forward.1}
  #allocation0 [shape = 'u32[]', space=smem, size = 0x4, offset = 0x4, fixed_abs, tag = 'smem constant byte address 0x4 - core index']
  #allocation1 [shape = 'u32[72,128]{1,0:T(1,128)}', space=vmem, size = 0x9000, scoped, tag = 'internal scratch']
  %s0 = inlined_call_operand.hbm [shape: f32[2,4,16,16], index: 0, kind: input, shape index: {}]
  %s1 = inlined_call_operand.vmem [shape: f32[32,16], index: 1, kind: input, shape index: {}]
  %s2 = inlined_call_operand.vmem [shape: f32[16,32], index: 2, kind: input, shape index: {}]
  %s3 = inlined_call_operand.hbm [shape: f32[2,4,32,32], index: 3, kind: output, shape index: {}]
  %s4 = sld [smem:[#allocation0]]
  $region49: #{skip_forward.1} parent=0
    _
  %s6 = ssub.s32 1, %s4
  %s7 = scalar_select 0, %s6, %s4
  $region1: #{skip_forward.1} parent=0
    #allocation2 [shape = 'u8[65536]{0}', space=vmem, size = 0x10000, scoped, tag = 'input window, operand 0']
    #allocation3 [shape = 's32[2]{0}', space=sflag, size = 0x8, scoped, tag = 'scoped memory for skip_forward.1']
    #allocation4 [shape = 's32[2]{0}', space=sflag, size = 0x8, scoped, tag = 'scoped memory for skip_forward.1']
    #allocation5 [shape = 'u8[131072]{0}', space=vmem, size = 0x20000, scoped, tag = 'output window, operand 0']
    %8 = vsyncpa [#allocation3], 0
    %s9 = scalar_lea.sflag [#allocation3], 1
    %10 = vsyncpa %s9, 0
    %11 = vsyncpa [#allocation4], 0
    %s12 = scalar_lea.sflag [#allocation4], 1
    %13 = vsyncpa %s12, 0
    loop: start=0, step=1, limit=4
    $region2: #{skip_forward.1} parent=1 // loop_pre_header
      _
    $region3: #{skip_forward.1} parent=1 // loop_header
      %s15 = sphi 0, %s19
      %p16 = scmp.ge.s32.totalorder %s15, 4
      %s25 = sphi 0, %s27
      %s28 = sphi 0, %s25
      %s29 = sphi 0, %s28
      %s45 = sphi 0, %s29
      %s49 = sphi 0, %s49
      %s51 = sphi 0, %s49
      %s52 = sphi 0, %s51
      %s66 = sphi 0, %s52
      %s70 = sphi 0, %s70
      %s72 = sphi 0, %s70
      %s73 = sphi 0, %s72
      %s87 = sphi 0, %s73
      %s93 = sphi 0, %s95
      %s96 = sphi 0, %s93
      %s97 = sphi 0, %s96
      %s113 = sphi 0, %s97
    $region4: #{skip_forward.1} parent=1 // loop_header_branch
      %18 = sbr.rel (%p16) target = $region8
    $region5: #{skip_forward.1} parent=1 // loop_body
      %s20 = ssub.s32 %s15, 1
      %s21 = ssub.s32 %s15, 2
      %s22 = sadd.s32 %s15, 1
      %s23 = ssub.s32 %s15, %s22
      %p24 = scmp.eq.s32.totalorder %s23, 0
      %s26 = sadd.s32 %s25, 1
      %s27 = scalar_select %p24, %s25, %s26
      %p30 = pneg %p24
      %p31 = scmp.eq.s32.totalorder %s15, 1
      %p32 = por %p30, %p31
      %p33 = scmp.ne.s32.totalorder %s25, %s28
      %p34 = scmp.eq.s32.totalorder %s15, 0
      %p35 = por %p33, %p34
      %p36 = scmp.ne.s32.totalorder %s25, %s28
      %p37 = scmp.eq.s32.totalorder %s20, 1
      %p38 = por %p36, %p37
      %p39 = scmp.ne.s32.totalorder %s28, %s29
      %p40 = scmp.eq.s32.totalorder %s20, 0
      %p41 = por %p39, %p40
      %p42 = scmp.ne.s32.totalorder %s28, %s29
      %p43 = scmp.eq.s32.totalorder %s21, 1
      %p44 = por %p42, %p43
      %p46 = scmp.ne.s32.totalorder %s29, %s45
      %p47 = scmp.eq.s32.totalorder %s21, 0
      %p48 = por %p46, %p47
      %s50 = sadd.s32 %s49, 1
      %p53 = scmp.eq.s32.totalorder %s15, 1
      %p54 = scmp.ne.s32.totalorder %s49, %s51
      %p55 = scmp.eq.s32.totalorder %s15, 0
      %p56 = por %p54, %p55
      %p57 = scmp.ne.s32.totalorder %s49, %s51
      %p58 = scmp.eq.s32.totalorder %s20, 1
      %p59 = por %p57, %p58
      %p60 = scmp.ne.s32.totalorder %s51, %s52
      %p61 = scmp.eq.s32.totalorder %s20, 0
      %p62 = por %p60, %p61
      %p63 = scmp.ne.s32.totalorder %s51, %s52
      %p64 = scmp.eq.s32.totalorder %s21, 1
      %p65 = por %p63, %p64
      %p67 = scmp.ne.s32.totalorder %s52, %s66
      %p68 = scmp.eq.s32.totalorder %s21, 0
      %p69 = por %p67, %p68
      %s71 = sadd.s32 %s70, 1
      %p74 = scmp.eq.s32.totalorder %s15, 1
      %p75 = scmp.ne.s32.totalorder %s70, %s72
      %p76 = scmp.eq.s32.totalorder %s15, 0
      %p77 = por %p75, %p76
      %p78 = scmp.ne.s32.totalorder %s70, %s72
      %p79 = scmp.eq.s32.totalorder %s20, 1
      %p80 = por %p78, %p79
      %p81 = scmp.ne.s32.totalorder %s72, %s73
      %p82 = scmp.eq.s32.totalorder %s20, 0
      %p83 = por %p81, %p82
      %p84 = scmp.ne.s32.totalorder %s72, %s73
      %p85 = scmp.eq.s32.totalorder %s21, 1
      %p86 = por %p84, %p85
      %p88 = scmp.ne.s32.totalorder %s73, %s87
      %p89 = scmp.eq.s32.totalorder %s21, 0
      %p90 = por %p88, %p89
      %s91 = ssub.s32 %s15, %s22
      %p92 = scmp.eq.s32.totalorder %s91, 0
      %s94 = sadd.s32 %s93, 1
      %s95 = scalar_select %p92, %s93, %s94
      %p98 = pneg %p92
      %p99 = scmp.eq.s32.totalorder %s15, 1
      %p100 = por %p98, %p99
      %p101 = scmp.ne.s32.totalorder %s93, %s96
      %p102 = scmp.eq.s32.totalorder %s15, 0
      %p103 = por %p101, %p102
      %p104 = scmp.ne.s32.totalorder %s93, %s96
      %p105 = scmp.eq.s32.totalorder %s20, 1
      %p106 = por %p104, %p105
      %p107 = scmp.ne.s32.totalorder %s96, %s97
      %p108 = scmp.eq.s32.totalorder %s20, 0
      %p109 = por %p107, %p108
      %p110 = scmp.ne.s32.totalorder %s96, %s97
      %p111 = scmp.eq.s32.totalorder %s21, 1
      %p112 = por %p110, %p111
      %p114 = scmp.ne.s32.totalorder %s97, %s113
      %p115 = scmp.eq.s32.totalorder %s21, 0
      %p116 = por %p114, %p115
      %p117 = scmp.le.s32.totalorder 1, %s15
      %p118 = scmp.lt.s32.totalorder %s15, 3
      %p119 = pnand %p117, %p118
      %p120 = pneg %p119
      // Predicated region
      $region9: #{skip_forward.1} parent=5 // pred_check
        _
      $region10: #{skip_forward.1} parent=5 // pred_check_branch
        %122 = sbr.rel (%p119) target = $region12
      $region11: #{skip_forward.1} parent=5 // pred_region
        %s123 = ssub.s32 %s15, 1
        // Predicated region
        $region13: #{skip_forward.1} parent=11 // pred_check
          %p124 = pneg %p62
        $region14: #{skip_forward.1} parent=11 // pred_check_branch
          %126 = sbr.rel (%p124) target = $region16
        $region15: #{skip_forward.1} parent=11 // pred_region
          _
        $region16: #{skip_forward.1} parent=11 // pred_fallthru
          _
        // Predicated region
        $region17: #{skip_forward.1} parent=11 // pred_check
          %p127 = pneg %p83
        $region18: #{skip_forward.1} parent=11 // pred_check_branch
          %129 = sbr.rel (%p127) target = $region20
        $region19: #{skip_forward.1} parent=11 // pred_region
          _
        $region20: #{skip_forward.1} parent=11 // pred_fallthru
          _
      $region12: #{skip_forward.1} parent=5 // pred_fallthru
        _
      %p130 = scmp.lt.s32.totalorder %s15, 2
      // Predicated region
      $region21: #{skip_forward.1} parent=5 // pred_check
        %p131 = pneg %p130
      $region22: #{skip_forward.1} parent=5 // pred_check_branch
        %133 = sbr.rel (%p131) target = $region24
      $region23: #{skip_forward.1} parent=5 // pred_region
        // Predicated region
        $region25: #{skip_forward.1} parent=23 // pred_check
          %p134 = pneg %p35
        $region26: #{skip_forward.1} parent=23 // pred_check_branch
          %136 = sbr.rel (%p134) target = $region28
        $region27: #{skip_forward.1} parent=23 // pred_region
          %s137 = sand.u32 %s25, 1
          %s138 = scalar_lea.sflag [#allocation3], %s137
          %s139 = sand.u32 %s25, 1
          %s140 = smul.addr %s139, 64
          %s141 = scalar_lea.vmem [#allocation2], %s140
          %143 = vsyncadd %s138, 0
          %s144 = smul.addr %s15, 8
          %s145 = smul.addr %s144, 8
          %s146 = scalar_lea.hbm %s0, %s145
          %s147 = sshll.u32 %s146, 4
          %s148 = int_to_ptr.hbm [resolvable:$true] %s147
          %s149 = sshll.u32 %s141, 4
          %s150 = int_to_ptr.vmem [resolvable:$true] %s149
          %155 = dma.hbm_to_vmem [thread:$0]  %s148, 1024, %s150, %s138, 128, 128, 8
        $region28: #{skip_forward.1} parent=23 // pred_fallthru
          _
      $region24: #{skip_forward.1} parent=5 // pred_fallthru
        _
      %p156 = scmp.le.s32.totalorder 1, %s15
      %p157 = scmp.lt.s32.totalorder %s15, 3
      %p158 = pnand %p156, %p157
      %p159 = pneg %p158
      // Predicated region
      $region29: #{skip_forward.1} parent=5 // pred_check
        _
      $region30: #{skip_forward.1} parent=5 // pred_check_branch
        %161 = sbr.rel (%p158) target = $region32
      $region31: #{skip_forward.1} parent=5 // pred_region
        %s162 = ssub.s32 %s15, 1
        %s163 = sand.u32 %s28, 1
        %s164 = scalar_lea.sflag [#allocation3], %s163
        %s165 = sand.u32 %s28, 1
        %s166 = smul.addr %s165, 64
        %s167 = scalar_lea.vmem [#allocation2], %s166
        // Predicated region
        $region33: #{skip_forward.1} parent=31 // pred_check
          %p168 = pneg %p41
        $region34: #{skip_forward.1} parent=31 // pred_check_branch
          %170 = sbr.rel (%p168) target = $region36
        $region35: #{skip_forward.1} parent=31 // pred_region
          %172 = dma.done %s164, 1024
        $region36: #{skip_forward.1} parent=31 // pred_fallthru
          _
        %s173 = sand.u32 %s28, 1
        %s174 = scalar_lea.sflag [#allocation3], %s173
        %s175 = sand.u32 %s28, 1
        %s176 = smul.addr %s175, 64
        %s177 = scalar_lea.vmem [#allocation2], %s176
        %p178 = pneg %p41
        %p179 = pneg %p38
        %p180 = pneg %p62
        %p181 = pneg %p59
        %p182 = pneg %p83
        %p183 = pneg %p80
        %p184 = pneg %p109
        %p185 = pneg %p106
        %s186 = sand.u32 %s96, 1
        %s187 = scalar_lea.sflag [#allocation4], %s186
        %s188 = sand.u32 %s96, 1
        %s189 = smul.addr %s188, 128
        %s190 = scalar_lea.vmem [#allocation5], %s189
        %v191 = vld [vmem:[%s167] sm:$0xff]
        %v192 = vld [vmem:[%s167 + $0x8] sm:$0xff]
        %v193 = vld [vmem:[%s2] sm:$0xff]
        %v194 = vld [vmem:[%s2 + $0x8] sm:$0xff]
        %vm195 = vcmask 130048
        %v197 = vsel %vm195, %v191, 0
        %v200 = vsel %vm195, %v192, 0
        %202 = vmatpush.msra.mxu0 0.0
        %203 = vmatpush.msra.mxu0 0.0
        %204 = vmatpush.msra.mxu0 0.0
        %205 = vmatpush.msra.mxu0 0.0
        %206 = vmatpush.msra.mxu0 0.0
        %207 = vmatpush.msra.mxu0 0.0
        %208 = vmatpush.msra.mxu0 0.0
        %209 = vmatpush.msra.mxu0 0.0
        %210 = vmatpush.msra.mxu0 0.0
        %211 = vmatpush.msra.mxu0 0.0
        %212 = vmatpush.msra.mxu0 0.0
        %213 = vmatpush.msra.mxu0 0.0
        %214 = vmatpush.msra.mxu0 0.0
        %215 = vmatpush.msra.mxu0 0.0
        %v216 = vand.u32 %v194, 4294901760
        %217 = vmatpush.msra.mxu0 %v216
        %v218 = vand.u32 %v193, 4294901760
        %219 = vmatpush.msra.mxu0 %v218
        %v220 = vand.u32 %v197, 4294901760
        %v221 = vsub.f32 %v197, %v220
        %v222 = vand.u32 %v221, 4294901760
        %v223 = vsub.f32 %v221, %v222
        %v224 = vand.u32 %v223, 4294901760
        %225 = vmatmul.f32.gmra.mxu0 %v224
        %v226 = vpop.f32.mrf.mxu0
        %v227 = vadd.f32 0.0, %v226
        %v228 = vand.u32 %v200, 4294901760
        %v229 = vsub.f32 %v200, %v228
        %v230 = vand.u32 %v229, 4294901760
        %v231 = vsub.f32 %v229, %v230
        %v232 = vand.u32 %v231, 4294901760
        %233 = vmatmul.f32.gmra.mxu0 %v232
        %v234 = vpop.f32.mrf.mxu0
        %v235 = vadd.f32 0.0, %v234
        %236 = vdwg.mxu0
        %237 = vmatpush.msra.mxu0 0.0
        %238 = vmatpush.msra.mxu0 0.0
        %239 = vmatpush.msra.mxu0 0.0
        %240 = vmatpush.msra.mxu0 0.0
        %241 = vmatpush.msra.mxu0 0.0
        %242 = vmatpush.msra.mxu0 0.0
        %243 = vmatpush.msra.mxu0 0.0
        %244 = vmatpush.msra.mxu0 0.0
        %245 = vmatpush.msra.mxu0 0.0
        %246 = vmatpush.msra.mxu0 0.0
        %247 = vmatpush.msra.mxu0 0.0
        %248 = vmatpush.msra.mxu0 0.0
        %249 = vmatpush.msra.mxu0 0.0
        %250 = vmatpush.msra.mxu0 0.0
        %v251 = vand.u32 %v194, 4294901760
        %v252 = vsub.f32 %v194, %v251
        %v253 = vand.u32 %v252, 4294901760
        %v254 = vsub.f32 %v252, %v253
        %v255 = vand.u32 %v254, 4294901760
        %256 = vmatpush.msra.mxu0 %v255
        %v257 = vand.u32 %v193, 4294901760
        %v258 = vsub.f32 %v193, %v257
        %v259 = vand.u32 %v258, 4294901760
        %v260 = vsub.f32 %v258, %v259
        %v261 = vand.u32 %v260, 4294901760
        %262 = vmatpush.msra.mxu0 %v261
        %v263 = vand.u32 %v197, 4294901760
        %264 = vmatmul.f32.gmra.mxu0 %v263
        %v265 = vpop.f32.mrf.mxu0
        %v266 = vadd.f32 %v227, %v265
        %v267 = vand.u32 %v200, 4294901760
        %268 = vmatmul.f32.gmra.mxu0 %v267
        %v269 = vpop.f32.mrf.mxu0
        %v270 = vadd.f32 %v235, %v269
        %271 = vdwg.mxu0
        %272 = vmatpush.msra.mxu0 0.0
        %273 = vmatpush.msra.mxu0 0.0
        %274 = vmatpush.msra.mxu0 0.0
        %275 = vmatpush.msra.mxu0 0.0
        %276 = vmatpush.msra.mxu0 0.0
        %277 = vmatpush.msra.mxu0 0.0
        %278 = vmatpush.msra.mxu0 0.0
        %279 = vmatpush.msra.mxu0 0.0
        %280 = vmatpush.msra.mxu0 0.0
        %281 = vmatpush.msra.mxu0 0.0
        %282 = vmatpush.msra.mxu0 0.0
        %283 = vmatpush.msra.mxu0 0.0
        %284 = vmatpush.msra.mxu0 0.0
        %285 = vmatpush.msra.mxu0 0.0
        %v286 = vand.u32 %v194, 4294901760
        %v287 = vsub.f32 %v194, %v286
        %288 = vmatpush.msra.mxu0 %v287
        %v289 = vand.u32 %v193, 4294901760
        %v290 = vsub.f32 %v193, %v289
        %291 = vmatpush.msra.mxu0 %v290
        %v292 = vand.u32 %v197, 4294901760
        %v293 = vsub.f32 %v197, %v292
        %294 = vmatmul.f32.gmra.mxu0 %v293
        %v295 = vpop.f32.mrf.mxu0
        %v296 = vadd.f32 %v266, %v295
        %v297 = vand.u32 %v200, 4294901760
        %v298 = vsub.f32 %v200, %v297
        %299 = vmatmul.f32.gmra.mxu0 %v298
        %v300 = vpop.f32.mrf.mxu0
        %v301 = vadd.f32 %v270, %v300
        %302 = vdwg.mxu0
        %303 = vmatpush.msra.mxu0 0.0
        %304 = vmatpush.msra.mxu0 0.0
        %305 = vmatpush.msra.mxu0 0.0
        %306 = vmatpush.msra.mxu0 0.0
        %307 = vmatpush.msra.mxu0 0.0
        %308 = vmatpush.msra.mxu0 0.0
        %309 = vmatpush.msra.mxu0 0.0
        %310 = vmatpush.msra.mxu0 0.0
        %311 = vmatpush.msra.mxu0 0.0
        %312 = vmatpush.msra.mxu0 0.0
        %313 = vmatpush.msra.mxu0 0.0
        %314 = vmatpush.msra.mxu0 0.0
        %315 = vmatpush.msra.mxu0 0.0
        %316 = vmatpush.msra.mxu0 0.0
        %v317 = vand.u32 %v194, 4294901760
        %318 = vmatpush.msra.mxu0 %v317
        %v319 = vand.u32 %v193, 4294901760
        %320 = vmatpush.msra.mxu0 %v319
        %v321 = vand.u32 %v197, 4294901760
        %v322 = vsub.f32 %v197, %v321
        %v323 = vand.u32 %v322, 4294901760
        %324 = vmatmul.f32.gmra.mxu0 %v323
        %v325 = vpop.f32.mrf.mxu0
        %v326 = vadd.f32 %v296, %v325
        %v327 = vand.u32 %v200, 4294901760
        %v328 = vsub.f32 %v200, %v327
        %v329 = vand.u32 %v328, 4294901760
        %330 = vmatmul.f32.gmra.mxu0 %v329
        %v331 = vpop.f32.mrf.mxu0
        %v332 = vadd.f32 %v301, %v331
        %333 = vdwg.mxu0
        %334 = vmatpush.msra.mxu0 0.0
        %335 = vmatpush.msra.mxu0 0.0
        %336 = vmatpush.msra.mxu0 0.0
        %337 = vmatpush.msra.mxu0 0.0
        %338 = vmatpush.msra.mxu0 0.0
        %339 = vmatpush.msra.mxu0 0.0
        %340 = vmatpush.msra.mxu0 0.0
        %341 = vmatpush.msra.mxu0 0.0
        %342 = vmatpush.msra.mxu0 0.0
        %343 = vmatpush.msra.mxu0 0.0
        %344 = vmatpush.msra.mxu0 0.0
        %345 = vmatpush.msra.mxu0 0.0
        %346 = vmatpush.msra.mxu0 0.0
        %347 = vmatpush.msra.mxu0 0.0
        %v348 = vand.u32 %v194, 4294901760
        %v349 = vsub.f32 %v194, %v348
        %v350 = vand.u32 %v349, 4294901760
        %351 = vmatpush.msra.mxu0 %v350
        %v352 = vand.u32 %v193, 4294901760
        %v353 = vsub.f32 %v193, %v352
        %v354 = vand.u32 %v353, 4294901760
        %355 = vmatpush.msra.mxu0 %v354
        %v356 = vand.u32 %v197, 4294901760
        %357 = vmatmul.f32.gmra.mxu0 %v356
        %v358 = vpop.f32.mrf.mxu0
        %v359 = vadd.f32 %v326, %v358
        %v360 = vand.u32 %v200, 4294901760
        %361 = vmatmul.f32.gmra.mxu0 %v360
        %v362 = vpop.f32.mrf.mxu0
        %v363 = vadd.f32 %v332, %v362
        %364 = vdwg.mxu0
        %365 = vmatpush.msra.mxu0 0.0
        %366 = vmatpush.msra.mxu0 0.0
        %367 = vmatpush.msra.mxu0 0.0
        %368 = vmatpush.msra.mxu0 0.0
        %369 = vmatpush.msra.mxu0 0.0
        %370 = vmatpush.msra.mxu0 0.0
        %371 = vmatpush.msra.mxu0 0.0
        %372 = vmatpush.msra.mxu0 0.0
        %373 = vmatpush.msra.mxu0 0.0
        %374 = vmatpush.msra.mxu0 0.0
        %375 = vmatpush.msra.mxu0 0.0
        %376 = vmatpush.msra.mxu0 0.0
        %377 = vmatpush.msra.mxu0 0.0
        %378 = vmatpush.msra.mxu0 0.0
        %v379 = vand.u32 %v194, 4294901760
        %380 = vmatpush.msra.mxu0 %v379
        %v381 = vand.u32 %v193, 4294901760
        %382 = vmatpush.msra.mxu0 %v381
        %v383 = vand.u32 %v197, 4294901760
        %384 = vmatmul.f32.gmra.mxu0 %v383
        %v385 = vpop.f32.mrf.mxu0
        %v386 = vadd.f32 %v359, %v385
        %v387 = vand.u32 %v200, 4294901760
        %388 = vmatmul.f32.gmra.mxu0 %v387
        %v389 = vpop.f32.mrf.mxu0
        %v390 = vadd.f32 %v363, %v389
        %391 = vdwg.mxu0
        %v392 = vld [vmem:[%s1] sm:$0xff]
        %v393 = vld [vmem:[%s1 + $0x8] sm:$0xff]
        %v394 = vld [vmem:[%s1 + $0x10] sm:$0xff]
        %v395 = vld [vmem:[%s1 + $0x18] sm:$0xff]
        %v397 = vsel %vm195, %v392, 0
        %v400 = vsel %vm195, %v393, 0
        %v403 = vsel %vm195, %v394, 0
        %v406 = vsel %vm195, %v395, 0
        %408 = vmatpush.msra.mxu0 0.0
        %409 = vmatpush.msra.mxu0 0.0
        %410 = vmatpush.msra.mxu0 0.0
        %411 = vmatpush.msra.mxu0 0.0
        %412 = vmatpush.msra.mxu0 0.0
        %413 = vmatpush.msra.mxu0 0.0
        %414 = vmatpush.msra.mxu0 0.0
        %415 = vmatpush.msra.mxu0 0.0
        %416 = vmatpush.msra.mxu0 0.0
        %417 = vmatpush.msra.mxu0 0.0
        %418 = vmatpush.msra.mxu0 0.0
        %419 = vmatpush.msra.mxu0 0.0
        %420 = vmatpush.msra.mxu0 0.0
        %421 = vmatpush.msra.mxu0 0.0
        %v422 = vand.u32 %v390, 4294901760
        %423 = vmatpush.msra.mxu0 %v422
        %v424 = vand.u32 %v386, 4294901760
        %425 = vmatpush.msra.mxu0 %v424
        %v426 = vand.u32 %v397, 4294901760
        %v427 = vsub.f32 %v397, %v426
        %v428 = vand.u32 %v427, 4294901760
        %v429 = vsub.f32 %v427, %v428
        %v430 = vand.u32 %v429, 4294901760
        %431 = vmatmul.f32.gmra.mxu0 %v430
        %v432 = vpop.f32.mrf.mxu0
        %v433 = vadd.f32 0.0, %v432
        %v434 = vand.u32 %v400, 4294901760
        %v435 = vsub.f32 %v400, %v434
        %v436 = vand.u32 %v435, 4294901760
        %v437 = vsub.f32 %v435, %v436
        %v438 = vand.u32 %v437, 4294901760
        %439 = vmatmul.f32.gmra.mxu0 %v438
        %v440 = vpop.f32.mrf.mxu0
        %v441 = vadd.f32 0.0, %v440
        %v442 = vand.u32 %v403, 4294901760
        %v443 = vsub.f32 %v403, %v442
        %v444 = vand.u32 %v443, 4294901760
        %v445 = vsub.f32 %v443, %v444
        %v446 = vand.u32 %v445, 4294901760
        %447 = vmatmul.f32.gmra.mxu0 %v446
        %v448 = vpop.f32.mrf.mxu0
        %v449 = vadd.f32 0.0, %v448
        %v450 = vand.u32 %v406, 4294901760
        %v451 = vsub.f32 %v406, %v450
        %v452 = vand.u32 %v451, 4294901760
        %v453 = vsub.f32 %v451, %v452
        %v454 = vand.u32 %v453, 4294901760
        %455 = vmatmul.f32.gmra.mxu0 %v454
        %v456 = vpop.f32.mrf.mxu0
        %v457 = vadd.f32 0.0, %v456
        %458 = vdwg.mxu0
        %459 = vmatpush.msra.mxu0 0.0
        %460 = vmatpush.msra.mxu0 0.0
        %461 = vmatpush.msra.mxu0 0.0
        %462 = vmatpush.msra.mxu0 0.0
        %463 = vmatpush.msra.mxu0 0.0
        %464 = vmatpush.msra.mxu0 0.0
        %465 = vmatpush.msra.mxu0 0.0
        %466 = vmatpush.msra.mxu0 0.0
        %467 = vmatpush.msra.mxu0 0.0
        %468 = vmatpush.msra.mxu0 0.0
        %469 = vmatpush.msra.mxu0 0.0
        %470 = vmatpush.msra.mxu0 0.0
        %471 = vmatpush.msra.mxu0 0.0
        %472 = vmatpush.msra.mxu0 0.0
        %v473 = vand.u32 %v390, 4294901760
        %v474 = vsub.f32 %v390, %v473
        %v475 = vand.u32 %v474, 4294901760
        %v476 = vsub.f32 %v474, %v475
        %v477 = vand.u32 %v476, 4294901760
        %478 = vmatpush.msra.mxu0 %v477
        %v479 = vand.u32 %v386, 4294901760
        %v480 = vsub.f32 %v386, %v479
        %v481 = vand.u32 %v480, 4294901760
        %v482 = vsub.f32 %v480, %v481
        %v483 = vand.u32 %v482, 4294901760
        %484 = vmatpush.msra.mxu0 %v483
        %v485 = vand.u32 %v397, 4294901760
        %486 = vmatmul.f32.gmra.mxu0 %v485
        %v487 = vpop.f32.mrf.mxu0
        %v488 = vadd.f32 %v433, %v487
        %v489 = vand.u32 %v400, 4294901760
        %490 = vmatmul.f32.gmra.mxu0 %v489
        %v491 = vpop.f32.mrf.mxu0
        %v492 = vadd.f32 %v441, %v491
        %v493 = vand.u32 %v403, 4294901760
        %494 = vmatmul.f32.gmra.mxu0 %v493
        %v495 = vpop.f32.mrf.mxu0
        %v496 = vadd.f32 %v449, %v495
        %v497 = vand.u32 %v406, 4294901760
        %498 = vmatmul.f32.gmra.mxu0 %v497
        %v499 = vpop.f32.mrf.mxu0
        %v500 = vadd.f32 %v457, %v499
        %501 = vdwg.mxu0
        %502 = vmatpush.msra.mxu0 0.0
        %503 = vmatpush.msra.mxu0 0.0
        %504 = vmatpush.msra.mxu0 0.0
        %505 = vmatpush.msra.mxu0 0.0
        %506 = vmatpush.msra.mxu0 0.0
        %507 = vmatpush.msra.mxu0 0.0
        %508 = vmatpush.msra.mxu0 0.0
        %509 = vmatpush.msra.mxu0 0.0
        %510 = vmatpush.msra.mxu0 0.0
        %511 = vmatpush.msra.mxu0 0.0
        %512 = vmatpush.msra.mxu0 0.0
        %513 = vmatpush.msra.mxu0 0.0
        %514 = vmatpush.msra.mxu0 0.0
        %515 = vmatpush.msra.mxu0 0.0
        %v516 = vand.u32 %v390, 4294901760
        %v517 = vsub.f32 %v390, %v516
        %518 = vmatpush.msra.mxu0 %v517
        %v519 = vand.u32 %v386, 4294901760
        %v520 = vsub.f32 %v386, %v519
        %521 = vmatpush.msra.mxu0 %v520
        %v522 = vand.u32 %v397, 4294901760
        %v523 = vsub.f32 %v397, %v522
        %524 = vmatmul.f32.gmra.mxu0 %v523
        %v525 = vpop.f32.mrf.mxu0
        %v526 = vadd.f32 %v488, %v525
        %v527 = vand.u32 %v400, 4294901760
        %v528 = vsub.f32 %v400, %v527
        %529 = vmatmul.f32.gmra.mxu0 %v528
        %v530 = vpop.f32.mrf.mxu0
        %v531 = vadd.f32 %v492, %v530
        %v532 = vand.u32 %v403, 4294901760
        %v533 = vsub.f32 %v403, %v532
        %534 = vmatmul.f32.gmra.mxu0 %v533
        %v535 = vpop.f32.mrf.mxu0
        %v536 = vadd.f32 %v496, %v535
        %v537 = vand.u32 %v406, 4294901760
        %v538 = vsub.f32 %v406, %v537
        %539 = vmatmul.f32.gmra.mxu0 %v538
        %v540 = vpop.f32.mrf.mxu0
        %v541 = vadd.f32 %v500, %v540
        %542 = vdwg.mxu0
        %543 = vmatpush.msra.mxu0 0.0
        %544 = vmatpush.msra.mxu0 0.0
        %545 = vmatpush.msra.mxu0 0.0
        %546 = vmatpush.msra.mxu0 0.0
        %547 = vmatpush.msra.mxu0 0.0
        %548 = vmatpush.msra.mxu0 0.0
        %549 = vmatpush.msra.mxu0 0.0
        %550 = vmatpush.msra.mxu0 0.0
        %551 = vmatpush.msra.mxu0 0.0
        %552 = vmatpush.msra.mxu0 0.0
        %553 = vmatpush.msra.mxu0 0.0
        %554 = vmatpush.msra.mxu0 0.0
        %555 = vmatpush.msra.mxu0 0.0
        %556 = vmatpush.msra.mxu0 0.0
        %v557 = vand.u32 %v390, 4294901760
        %558 = vmatpush.msra.mxu0 %v557
        %v559 = vand.u32 %v386, 4294901760
        %560 = vmatpush.msra.mxu0 %v559
        %v561 = vand.u32 %v397, 4294901760
        %v562 = vsub.f32 %v397, %v561
        %v563 = vand.u32 %v562, 4294901760
        %564 = vmatmul.f32.gmra.mxu0 %v563
        %v565 = vpop.f32.mrf.mxu0
        %v566 = vadd.f32 %v526, %v565
        %v567 = vand.u32 %v400, 4294901760
        %v568 = vsub.f32 %v400, %v567
        %v569 = vand.u32 %v568, 4294901760
        %570 = vmatmul.f32.gmra.mxu0 %v569
        %v571 = vpop.f32.mrf.mxu0
        %v572 = vadd.f32 %v531, %v571
        %v573 = vand.u32 %v403, 4294901760
        %v574 = vsub.f32 %v403, %v573
        %v575 = vand.u32 %v574, 4294901760
        %576 = vmatmul.f32.gmra.mxu0 %v575
        %v577 = vpop.f32.mrf.mxu0
        %v578 = vadd.f32 %v536, %v577
        %v579 = vand.u32 %v406, 4294901760
        %v580 = vsub.f32 %v406, %v579
        %v581 = vand.u32 %v580, 4294901760
        %582 = vmatmul.f32.gmra.mxu0 %v581
        %v583 = vpop.f32.mrf.mxu0
        %v584 = vadd.f32 %v541, %v583
        %585 = vdwg.mxu0
        %586 = vmatpush.msra.mxu0 0.0
        %587 = vmatpush.msra.mxu0 0.0
        %588 = vmatpush.msra.mxu0 0.0
        %589 = vmatpush.msra.mxu0 0.0
        %590 = vmatpush.msra.mxu0 0.0
        %591 = vmatpush.msra.mxu0 0.0
        %592 = vmatpush.msra.mxu0 0.0
        %593 = vmatpush.msra.mxu0 0.0
        %594 = vmatpush.msra.mxu0 0.0
        %595 = vmatpush.msra.mxu0 0.0
        %596 = vmatpush.msra.mxu0 0.0
        %597 = vmatpush.msra.mxu0 0.0
        %598 = vmatpush.msra.mxu0 0.0
        %599 = vmatpush.msra.mxu0 0.0
        %v600 = vand.u32 %v390, 4294901760
        %v601 = vsub.f32 %v390, %v600
        %v602 = vand.u32 %v601, 4294901760
        %603 = vmatpush.msra.mxu0 %v602
        %v604 = vand.u32 %v386, 4294901760
        %v605 = vsub.f32 %v386, %v604
        %v606 = vand.u32 %v605, 4294901760
        %607 = vmatpush.msra.mxu0 %v606
        %v608 = vand.u32 %v397, 4294901760
        %609 = vmatmul.f32.gmra.mxu0 %v608
        %v610 = vpop.f32.mrf.mxu0
        %v611 = vadd.f32 %v566, %v610
        %v612 = vand.u32 %v400, 4294901760
        %613 = vmatmul.f32.gmra.mxu0 %v612
        %v614 = vpop.f32.mrf.mxu0
        %v615 = vadd.f32 %v572, %v614
        %v616 = vand.u32 %v403, 4294901760
        %617 = vmatmul.f32.gmra.mxu0 %v616
        %v618 = vpop.f32.mrf.mxu0
        %v619 = vadd.f32 %v578, %v618
        %v620 = vand.u32 %v406, 4294901760
        %621 = vmatmul.f32.gmra.mxu0 %v620
        %v622 = vpop.f32.mrf.mxu0
        %v623 = vadd.f32 %v584, %v622
        %624 = vdwg.mxu0
        %625 = vmatpush.msra.mxu0 0.0
        %626 = vmatpush.msra.mxu0 0.0
        %627 = vmatpush.msra.mxu0 0.0
        %628 = vmatpush.msra.mxu0 0.0
        %629 = vmatpush.msra.mxu0 0.0
        %630 = vmatpush.msra.mxu0 0.0
        %631 = vmatpush.msra.mxu0 0.0
        %632 = vmatpush.msra.mxu0 0.0
        %633 = vmatpush.msra.mxu0 0.0
        %634 = vmatpush.msra.mxu0 0.0
        %635 = vmatpush.msra.mxu0 0.0
        %636 = vmatpush.msra.mxu0 0.0
        %637 = vmatpush.msra.mxu0 0.0
        %638 = vmatpush.msra.mxu0 0.0
        %v639 = vand.u32 %v390, 4294901760
        %640 = vmatpush.msra.mxu0 %v639
        %v641 = vand.u32 %v386, 4294901760
        %642 = vmatpush.msra.mxu0 %v641
        %v643 = vand.u32 %v397, 4294901760
        %644 = vmatmul.f32.gmra.mxu0 %v643
        %v645 = vpop.f32.mrf.mxu0
        %v646 = vadd.f32 %v611, %v645
        %v647 = vand.u32 %v400, 4294901760
        %648 = vmatmul.f32.gmra.mxu0 %v647
        %v649 = vpop.f32.mrf.mxu0
        %v650 = vadd.f32 %v615, %v649
        %v651 = vand.u32 %v403, 4294901760
        %652 = vmatmul.f32.gmra.mxu0 %v651
        %v653 = vpop.f32.mrf.mxu0
        %v654 = vadd.f32 %v619, %v653
        %v655 = vand.u32 %v406, 4294901760
        %656 = vmatmul.f32.gmra.mxu0 %v655
        %v657 = vpop.f32.mrf.mxu0
        %v658 = vadd.f32 %v623, %v657
        %659 = vdwg.mxu0
        %vm660 = vcmask 261120
        %661 = vst.msk [vmem:[%s190] sm:$0xff] %vm660, %v646
        %662 = vst.msk [vmem:[%s190 + $0x8] sm:$0xff] %vm660, %v650
        %663 = vst.msk [vmem:[%s190 + $0x10] sm:$0xff] %vm660, %v654
        %664 = vst.msk [vmem:[%s190 + $0x18] sm:$0xff] %vm660, %v658
        %s665 = scalar_lea.vmem %s167, 16 [#allocation2]
        %v666 = vld [vmem:[%s665] sm:$0xff]
        %v667 = vld [vmem:[%s665 + $0x8] sm:$0xff]
        %v668 = vld [vmem:[%s2] sm:$0xff]
        %v669 = vld [vmem:[%s2 + $0x8] sm:$0xff]
        %v671 = vsel %vm195, %v666, 0
        %v674 = vsel %vm195, %v667, 0
        %676 = vmatpush.msra.mxu0 0.0
        %677 = vmatpush.msra.mxu0 0.0
        %678 = vmatpush.msra.mxu0 0.0
        %679 = vmatpush.msra.mxu0 0.0
        %680 = vmatpush.msra.mxu0 0.0
        %681 = vmatpush.msra.mxu0 0.0
        %682 = vmatpush.msra.mxu0 0.0
        %683 = vmatpush.msra.mxu0 0.0
        %684 = vmatpush.msra.mxu0 0.0
        %685 = vmatpush.msra.mxu0 0.0
        %686 = vmatpush.msra.mxu0 0.0
        %687 = vmatpush.msra.mxu0 0.0
        %688 = vmatpush.msra.mxu0 0.0
        %689 = vmatpush.msra.mxu0 0.0
        %v690 = vand.u32 %v669, 4294901760
        %691 = vmatpush.msra.mxu0 %v690
        %v692 = vand.u32 %v668, 4294901760
        %693 = vmatpush.msra.mxu0 %v692
        %v694 = vand.u32 %v671, 4294901760
        %v695 = vsub.f32 %v671, %v694
        %v696 = vand.u32 %v695, 4294901760
        %v697 = vsub.f32 %v695, %v696
        %v698 = vand.u32 %v697, 4294901760
        %699 = vmatmul.f32.gmra.mxu0 %v698
        %v700 = vpop.f32.mrf.mxu0
        %v701 = vadd.f32 0.0, %v700
        %v702 = vand.u32 %v674, 4294901760
        %v703 = vsub.f32 %v674, %v702
        %v704 = vand.u32 %v703, 4294901760
        %v705 = vsub.f32 %v703, %v704
        %v706 = vand.u32 %v705, 4294901760
        %707 = vmatmul.f32.gmra.mxu0 %v706
        %v708 = vpop.f32.mrf.mxu0
        %v709 = vadd.f32 0.0, %v708
        %710 = vdwg.mxu0
        %711 = vmatpush.msra.mxu0 0.0
        %712 = vmatpush.msra.mxu0 0.0
        %713 = vmatpush.msra.mxu0 0.0
        %714 = vmatpush.msra.mxu0 0.0
        %715 = vmatpush.msra.mxu0 0.0
        %716 = vmatpush.msra.mxu0 0.0
        %717 = vmatpush.msra.mxu0 0.0
        %718 = vmatpush.msra.mxu0 0.0
        %719 = vmatpush.msra.mxu0 0.0
        %720 = vmatpush.msra.mxu0 0.0
        %721 = vmatpush.msra.mxu0 0.0
        %722 = vmatpush.msra.mxu0 0.0
        %723 = vmatpush.msra.mxu0 0.0
        %724 = vmatpush.msra.mxu0 0.0
        %v725 = vand.u32 %v669, 4294901760
        %v726 = vsub.f32 %v669, %v725
        %v727 = vand.u32 %v726, 4294901760
        %v728 = vsub.f32 %v726, %v727
        %v729 = vand.u32 %v728, 4294901760
        %730 = vmatpush.msra.mxu0 %v729
        %v731 = vand.u32 %v668, 4294901760
        %v732 = vsub.f32 %v668, %v731
        %v733 = vand.u32 %v732, 4294901760
        %v734 = vsub.f32 %v732, %v733
        %v735 = vand.u32 %v734, 4294901760
        %736 = vmatpush.msra.mxu0 %v735
        %v737 = vand.u32 %v671, 4294901760
        %738 = vmatmul.f32.gmra.mxu0 %v737
        %v739 = vpop.f32.mrf.mxu0
        %v740 = vadd.f32 %v701, %v739
        %v741 = vand.u32 %v674, 4294901760
        %742 = vmatmul.f32.gmra.mxu0 %v741
        %v743 = vpop.f32.mrf.mxu0
        %v744 = vadd.f32 %v709, %v743
        %745 = vdwg.mxu0
        %746 = vmatpush.msra.mxu0 0.0
        %747 = vmatpush.msra.mxu0 0.0
        %748 = vmatpush.msra.mxu0 0.0
        %749 = vmatpush.msra.mxu0 0.0
        %750 = vmatpush.msra.mxu0 0.0
        %751 = vmatpush.msra.mxu0 0.0
        %752 = vmatpush.msra.mxu0 0.0
        %753 = vmatpush.msra.mxu0 0.0
        %754 = vmatpush.msra.mxu0 0.0
        %755 = vmatpush.msra.mxu0 0.0
        %756 = vmatpush.msra.mxu0 0.0
        %757 = vmatpush.msra.mxu0 0.0
        %758 = vmatpush.msra.mxu0 0.0
        %759 = vmatpush.msra.mxu0 0.0
        %v760 = vand.u32 %v669, 4294901760
        %v761 = vsub.f32 %v669, %v760
        %762 = vmatpush.msra.mxu0 %v761
        %v763 = vand.u32 %v668, 4294901760
        %v764 = vsub.f32 %v668, %v763
        %765 = vmatpush.msra.mxu0 %v764
        %v766 = vand.u32 %v671, 4294901760
        %v767 = vsub.f32 %v671, %v766
        %768 = vmatmul.f32.gmra.mxu0 %v767
        %v769 = vpop.f32.mrf.mxu0
        %v770 = vadd.f32 %v740, %v769
        %v771 = vand.u32 %v674, 4294901760
        %v772 = vsub.f32 %v674, %v771
        %773 = vmatmul.f32.gmra.mxu0 %v772
        %v774 = vpop.f32.mrf.mxu0
        %v775 = vadd.f32 %v744, %v774
        %776 = vdwg.mxu0
        %777 = vmatpush.msra.mxu0 0.0
        %778 = vmatpush.msra.mxu0 0.0
        %779 = vmatpush.msra.mxu0 0.0
        %780 = vmatpush.msra.mxu0 0.0
        %781 = vmatpush.msra.mxu0 0.0
        %782 = vmatpush.msra.mxu0 0.0
        %783 = vmatpush.msra.mxu0 0.0
        %784 = vmatpush.msra.mxu0 0.0
        %785 = vmatpush.msra.mxu0 0.0
        %786 = vmatpush.msra.mxu0 0.0
        %787 = vmatpush.msra.mxu0 0.0
        %788 = vmatpush.msra.mxu0 0.0
        %789 = vmatpush.msra.mxu0 0.0
        %790 = vmatpush.msra.mxu0 0.0
        %v791 = vand.u32 %v669, 4294901760
        %792 = vmatpush.msra.mxu0 %v791
        %v793 = vand.u32 %v668, 4294901760
        %794 = vmatpush.msra.mxu0 %v793
        %v795 = vand.u32 %v671, 4294901760
        %v796 = vsub.f32 %v671, %v795
        %v797 = vand.u32 %v796, 4294901760
        %798 = vmatmul.f32.gmra.mxu0 %v797
        %v799 = vpop.f32.mrf.mxu0
        %v800 = vadd.f32 %v770, %v799
        %v801 = vand.u32 %v674, 4294901760
        %v802 = vsub.f32 %v674, %v801
        %v803 = vand.u32 %v802, 4294901760
        %804 = vmatmul.f32.gmra.mxu0 %v803
        %v805 = vpop.f32.mrf.mxu0
        %v806 = vadd.f32 %v775, %v805
        %807 = vdwg.mxu0
        %808 = vmatpush.msra.mxu0 0.0
        %809 = vmatpush.msra.mxu0 0.0
        %810 = vmatpush.msra.mxu0 0.0
        %811 = vmatpush.msra.mxu0 0.0
        %812 = vmatpush.msra.mxu0 0.0
        %813 = vmatpush.msra.mxu0 0.0
        %814 = vmatpush.msra.mxu0 0.0
        %815 = vmatpush.msra.mxu0 0.0
        %816 = vmatpush.msra.mxu0 0.0
        %817 = vmatpush.msra.mxu0 0.0
        %818 = vmatpush.msra.mxu0 0.0
        %819 = vmatpush.msra.mxu0 0.0
        %820 = vmatpush.msra.mxu0 0.0
        %821 = vmatpush.msra.mxu0 0.0
        %v822 = vand.u32 %v669, 4294901760
        %v823 = vsub.f32 %v669, %v822
        %v824 = vand.u32 %v823, 4294901760
        %825 = vmatpush.msra.mxu0 %v824
        %v826 = vand.u32 %v668, 4294901760
        %v827 = vsub.f32 %v668, %v826
        %v828 = vand.u32 %v827, 4294901760
        %829 = vmatpush.msra.mxu0 %v828
        %v830 = vand.u32 %v671, 4294901760
        %831 = vmatmul.f32.gmra.mxu0 %v830
        %v832 = vpop.f32.mrf.mxu0
        %v833 = vadd.f32 %v800, %v832
        %v834 = vand.u32 %v674, 4294901760
        %835 = vmatmul.f32.gmra.mxu0 %v834
        %v836 = vpop.f32.mrf.mxu0
        %v837 = vadd.f32 %v806, %v836
        %838 = vdwg.mxu0
        %839 = vmatpush.msra.mxu0 0.0
        %840 = vmatpush.msra.mxu0 0.0
        %841 = vmatpush.msra.mxu0 0.0
        %842 = vmatpush.msra.mxu0 0.0
        %843 = vmatpush.msra.mxu0 0.0
        %844 = vmatpush.msra.mxu0 0.0
        %845 = vmatpush.msra.mxu0 0.0
        %846 = vmatpush.msra.mxu0 0.0
        %847 = vmatpush.msra.mxu0 0.0
        %848 = vmatpush.msra.mxu0 0.0
        %849 = vmatpush.msra.mxu0 0.0
        %850 = vmatpush.msra.mxu0 0.0
        %851 = vmatpush.msra.mxu0 0.0
        %852 = vmatpush.msra.mxu0 0.0
        %v853 = vand.u32 %v669, 4294901760
        %854 = vmatpush.msra.mxu0 %v853
        %v855 = vand.u32 %v668, 4294901760
        %856 = vmatpush.msra.mxu0 %v855
        %v857 = vand.u32 %v671, 4294901760
        %858 = vmatmul.f32.gmra.mxu0 %v857
        %v859 = vpop.f32.mrf.mxu0
        %v860 = vadd.f32 %v833, %v859
        %v861 = vand.u32 %v674, 4294901760
        %862 = vmatmul.f32.gmra.mxu0 %v861
        %v863 = vpop.f32.mrf.mxu0
        %v864 = vadd.f32 %v837, %v863
        %865 = vdwg.mxu0
        %v866 = vld [vmem:[%s1] sm:$0xff]
        %v867 = vld [vmem:[%s1 + $0x8] sm:$0xff]
        %v868 = vld [vmem:[%s1 + $0x10] sm:$0xff]
        %v869 = vld [vmem:[%s1 + $0x18] sm:$0xff]
        %v871 = vsel %vm195, %v866, 0
        %v874 = vsel %vm195, %v867, 0
        %v877 = vsel %vm195, %v868, 0
        %v880 = vsel %vm195, %v869, 0
        %882 = vmatpush.msra.mxu0 0.0
        %883 = vmatpush.msra.mxu0 0.0
        %884 = vmatpush.msra.mxu0 0.0
        %885 = vmatpush.msra.mxu0 0.0
        %886 = vmatpush.msra.mxu0 0.0
        %887 = vmatpush.msra.mxu0 0.0
        %888 = vmatpush.msra.mxu0 0.0
        %889 = vmatpush.msra.mxu0 0.0
        %890 = vmatpush.msra.mxu0 0.0
        %891 = vmatpush.msra.mxu0 0.0
        %892 = vmatpush.msra.mxu0 0.0
        %893 = vmatpush.msra.mxu0 0.0
        %894 = vmatpush.msra.mxu0 0.0
        %895 = vmatpush.msra.mxu0 0.0
        %v896 = vand.u32 %v864, 4294901760
        %897 = vmatpush.msra.mxu0 %v896
        %v898 = vand.u32 %v860, 4294901760
        %899 = vmatpush.msra.mxu0 %v898
        %v900 = vand.u32 %v871, 4294901760
        %v901 = vsub.f32 %v871, %v900
        %v902 = vand.u32 %v901, 4294901760
        %v903 = vsub.f32 %v901, %v902
        %v904 = vand.u32 %v903, 4294901760
        %905 = vmatmul.f32.gmra.mxu0 %v904
        %v906 = vpop.f32.mrf.mxu0
        %v907 = vadd.f32 0.0, %v906
        %v908 = vand.u32 %v874, 4294901760
        %v909 = vsub.f32 %v874, %v908
        %v910 = vand.u32 %v909, 4294901760
        %v911 = vsub.f32 %v909, %v910
        %v912 = vand.u32 %v911, 4294901760
        %913 = vmatmul.f32.gmra.mxu0 %v912
        %v914 = vpop.f32.mrf.mxu0
        %v915 = vadd.f32 0.0, %v914
        %v916 = vand.u32 %v877, 4294901760
        %v917 = vsub.f32 %v877, %v916
        %v918 = vand.u32 %v917, 4294901760
        %v919 = vsub.f32 %v917, %v918
        %v920 = vand.u32 %v919, 4294901760
        %921 = vmatmul.f32.gmra.mxu0 %v920
        %v922 = vpop.f32.mrf.mxu0
        %v923 = vadd.f32 0.0, %v922
        %v924 = vand.u32 %v880, 4294901760
        %v925 = vsub.f32 %v880, %v924
        %v926 = vand.u32 %v925, 4294901760
        %v927 = vsub.f32 %v925, %v926
        %v928 = vand.u32 %v927, 4294901760
        %929 = vmatmul.f32.gmra.mxu0 %v928
        %v930 = vpop.f32.mrf.mxu0
        %v931 = vadd.f32 0.0, %v930
        %932 = vdwg.mxu0
        %933 = vmatpush.msra.mxu0 0.0
        %934 = vmatpush.msra.mxu0 0.0
        %935 = vmatpush.msra.mxu0 0.0
        %936 = vmatpush.msra.mxu0 0.0
        %937 = vmatpush.msra.mxu0 0.0
        %938 = vmatpush.msra.mxu0 0.0
        %939 = vmatpush.msra.mxu0 0.0
        %940 = vmatpush.msra.mxu0 0.0
        %941 = vmatpush.msra.mxu0 0.0
        %942 = vmatpush.msra.mxu0 0.0
        %943 = vmatpush.msra.mxu0 0.0
        %944 = vmatpush.msra.mxu0 0.0
        %945 = vmatpush.msra.mxu0 0.0
        %946 = vmatpush.msra.mxu0 0.0
        %v947 = vand.u32 %v864, 4294901760
        %v948 = vsub.f32 %v864, %v947
        %v949 = vand.u32 %v948, 4294901760
        %v950 = vsub.f32 %v948, %v949
        %v951 = vand.u32 %v950, 4294901760
        %952 = vmatpush.msra.mxu0 %v951
        %v953 = vand.u32 %v860, 4294901760
        %v954 = vsub.f32 %v860, %v953
        %v955 = vand.u32 %v954, 4294901760
        %v956 = vsub.f32 %v954, %v955
        %v957 = vand.u32 %v956, 4294901760
        %958 = vmatpush.msra.mxu0 %v957
        %v959 = vand.u32 %v871, 4294901760
        %960 = vmatmul.f32.gmra.mxu0 %v959
        %v961 = vpop.f32.mrf.mxu0
        %v962 = vadd.f32 %v907, %v961
        %v963 = vand.u32 %v874, 4294901760
        %964 = vmatmul.f32.gmra.mxu0 %v963
        %v965 = vpop.f32.mrf.mxu0
        %v966 = vadd.f32 %v915, %v965
        %v967 = vand.u32 %v877, 4294901760
        %968 = vmatmul.f32.gmra.mxu0 %v967
        %v969 = vpop.f32.mrf.mxu0
        %v970 = vadd.f32 %v923, %v969
        %v971 = vand.u32 %v880, 4294901760
        %972 = vmatmul.f32.gmra.mxu0 %v971
        %v973 = vpop.f32.mrf.mxu0
        %v974 = vadd.f32 %v931, %v973
        %975 = vdwg.mxu0
        %976 = vmatpush.msra.mxu0 0.0
        %977 = vmatpush.msra.mxu0 0.0
        %978 = vmatpush.msra.mxu0 0.0
        %979 = vmatpush.msra.mxu0 0.0
        %980 = vmatpush.msra.mxu0 0.0
        %981 = vmatpush.msra.mxu0 0.0
        %982 = vmatpush.msra.mxu0 0.0
        %983 = vmatpush.msra.mxu0 0.0
        %984 = vmatpush.msra.mxu0 0.0
        %985 = vmatpush.msra.mxu0 0.0
        %986 = vmatpush.msra.mxu0 0.0
        %987 = vmatpush.msra.mxu0 0.0
        %988 = vmatpush.msra.mxu0 0.0
        %989 = vmatpush.msra.mxu0 0.0
        %v990 = vand.u32 %v864, 4294901760
        %v991 = vsub.f32 %v864, %v990
        %992 = vmatpush.msra.mxu0 %v991
        %v993 = vand.u32 %v860, 4294901760
        %v994 = vsub.f32 %v860, %v993
        %995 = vmatpush.msra.mxu0 %v994
        %v996 = vand.u32 %v871, 4294901760
        %v997 = vsub.f32 %v871, %v996
        %998 = vmatmul.f32.gmra.mxu0 %v997
        %v999 = vpop.f32.mrf.mxu0
        %v1000 = vadd.f32 %v962, %v999
        %v1001 = vand.u32 %v874, 4294901760
        %v1002 = vsub.f32 %v874, %v1001
        %1003 = vmatmul.f32.gmra.mxu0 %v1002
        %v1004 = vpop.f32.mrf.mxu0
        %v1005 = vadd.f32 %v966, %v1004
        %v1006 = vand.u32 %v877, 4294901760
        %v1007 = vsub.f32 %v877, %v1006
        %1008 = vmatmul.f32.gmra.mxu0 %v1007
        %v1009 = vpop.f32.mrf.mxu0
        %v1010 = vadd.f32 %v970, %v1009
        %v1011 = vand.u32 %v880, 4294901760
        %v1012 = vsub.f32 %v880, %v1011
        %1013 = vmatmul.f32.gmra.mxu0 %v1012
        %v1014 = vpop.f32.mrf.mxu0
        %v1015 = vadd.f32 %v974, %v1014
        %1016 = vdwg.mxu0
        %1017 = vmatpush.msra.mxu0 0.0
        %1018 = vmatpush.msra.mxu0 0.0
        %1019 = vmatpush.msra.mxu0 0.0
        %1020 = vmatpush.msra.mxu0 0.0
        %1021 = vmatpush.msra.mxu0 0.0
        %1022 = vmatpush.msra.mxu0 0.0
        %1023 = vmatpush.msra.mxu0 0.0
        %1024 = vmatpush.msra.mxu0 0.0
        %1025 = vmatpush.msra.mxu0 0.0
        %1026 = vmatpush.msra.mxu0 0.0
        %1027 = vmatpush.msra.mxu0 0.0
        %1028 = vmatpush.msra.mxu0 0.0
        %1029 = vmatpush.msra.mxu0 0.0
        %1030 = vmatpush.msra.mxu0 0.0
        %v1031 = vand.u32 %v864, 4294901760
        %1032 = vmatpush.msra.mxu0 %v1031
        %v1033 = vand.u32 %v860, 4294901760
        %1034 = vmatpush.msra.mxu0 %v1033
        %v1035 = vand.u32 %v871, 4294901760
        %v1036 = vsub.f32 %v871, %v1035
        %v1037 = vand.u32 %v1036, 4294901760
        %1038 = vmatmul.f32.gmra.mxu0 %v1037
        %v1039 = vpop.f32.mrf.mxu0
        %v1040 = vadd.f32 %v1000, %v1039
        %v1041 = vand.u32 %v874, 4294901760
        %v1042 = vsub.f32 %v874, %v1041
        %v1043 = vand.u32 %v1042, 4294901760
        %1044 = vmatmul.f32.gmra.mxu0 %v1043
        %v1045 = vpop.f32.mrf.mxu0
        %v1046 = vadd.f32 %v1005, %v1045
        %v1047 = vand.u32 %v877, 4294901760
        %v1048 = vsub.f32 %v877, %v1047
        %v1049 = vand.u32 %v1048, 4294901760
        %1050 = vmatmul.f32.gmra.mxu0 %v1049
        %v1051 = vpop.f32.mrf.mxu0
        %v1052 = vadd.f32 %v1010, %v1051
        %v1053 = vand.u32 %v880, 4294901760
        %v1054 = vsub.f32 %v880, %v1053
        %v1055 = vand.u32 %v1054, 4294901760
        %1056 = vmatmul.f32.gmra.mxu0 %v1055
        %v1057 = vpop.f32.mrf.mxu0
        %v1058 = vadd.f32 %v1015, %v1057
        %1059 = vdwg.mxu0
        %1060 = vmatpush.msra.mxu0 0.0
        %1061 = vmatpush.msra.mxu0 0.0
        %1062 = vmatpush.msra.mxu0 0.0
        %1063 = vmatpush.msra.mxu0 0.0
        %1064 = vmatpush.msra.mxu0 0.0
        %1065 = vmatpush.msra.mxu0 0.0
        %1066 = vmatpush.msra.mxu0 0.0
        %1067 = vmatpush.msra.mxu0 0.0
        %1068 = vmatpush.msra.mxu0 0.0
        %1069 = vmatpush.msra.mxu0 0.0
        %1070 = vmatpush.msra.mxu0 0.0
        %1071 = vmatpush.msra.mxu0 0.0
        %1072 = vmatpush.msra.mxu0 0.0
        %1073 = vmatpush.msra.mxu0 0.0
        %v1074 = vand.u32 %v864, 4294901760
        %v1075 = vsub.f32 %v864, %v1074
        %v1076 = vand.u32 %v1075, 4294901760
        %1077 = vmatpush.msra.mxu0 %v1076
        %v1078 = vand.u32 %v860, 4294901760
        %v1079 = vsub.f32 %v860, %v1078
        %v1080 = vand.u32 %v1079, 4294901760
        %1081 = vmatpush.msra.mxu0 %v1080
        %v1082 = vand.u32 %v871, 4294901760
        %1083 = vmatmul.f32.gmra.mxu0 %v1082
        %v1084 = vpop.f32.mrf.mxu0
        %v1085 = vadd.f32 %v1040, %v1084
        %v1086 = vand.u32 %v874, 4294901760
        %1087 = vmatmul.f32.gmra.mxu0 %v1086
        %v1088 = vpop.f32.mrf.mxu0
        %v1089 = vadd.f32 %v1046, %v1088
        %v1090 = vand.u32 %v877, 4294901760
        %1091 = vmatmul.f32.gmra.mxu0 %v1090
        %v1092 = vpop.f32.mrf.mxu0
        %v1093 = vadd.f32 %v1052, %v1092
        %v1094 = vand.u32 %v880, 4294901760
        %1095 = vmatmul.f32.gmra.mxu0 %v1094
        %v1096 = vpop.f32.mrf.mxu0
        %v1097 = vadd.f32 %v1058, %v1096
        %1098 = vdwg.mxu0
        %1099 = vmatpush.msra.mxu0 0.0
        %1100 = vmatpush.msra.mxu0 0.0
        %1101 = vmatpush.msra.mxu0 0.0
        %1102 = vmatpush.msra.mxu0 0.0
        %1103 = vmatpush.msra.mxu0 0.0
        %1104 = vmatpush.msra.mxu0 0.0
        %1105 = vmatpush.msra.mxu0 0.0
        %1106 = vmatpush.msra.mxu0 0.0
        %1107 = vmatpush.msra.mxu0 0.0
        %1108 = vmatpush.msra.mxu0 0.0
        %1109 = vmatpush.msra.mxu0 0.0
        %1110 = vmatpush.msra.mxu0 0.0
        %1111 = vmatpush.msra.mxu0 0.0
        %1112 = vmatpush.msra.mxu0 0.0
        %v1113 = vand.u32 %v864, 4294901760
        %1114 = vmatpush.msra.mxu0 %v1113
        %v1115 = vand.u32 %v860, 4294901760
        %1116 = vmatpush.msra.mxu0 %v1115
        %v1117 = vand.u32 %v871, 4294901760
        %1118 = vmatmul.f32.gmra.mxu0 %v1117
        %v1119 = vpop.f32.mrf.mxu0
        %v1120 = vadd.f32 %v1085, %v1119
        %v1121 = vand.u32 %v874, 4294901760
        %1122 = vmatmul.f32.gmra.mxu0 %v1121
        %v1123 = vpop.f32.mrf.mxu0
        %v1124 = vadd.f32 %v1089, %v1123
        %v1125 = vand.u32 %v877, 4294901760
        %1126 = vmatmul.f32.gmra.mxu0 %v1125
        %v1127 = vpop.f32.mrf.mxu0
        %v1128 = vadd.f32 %v1093, %v1127
        %v1129 = vand.u32 %v880, 4294901760
        %1130 = vmatmul.f32.gmra.mxu0 %v1129
        %v1131 = vpop.f32.mrf.mxu0
        %v1132 = vadd.f32 %v1097, %v1131
        %1133 = vdwg.mxu0
        %s1134 = scalar_lea.vmem %s190, 32 [#allocation5]
        %1135 = vst.msk [vmem:[%s1134] sm:$0xff] %vm660, %v1120
        %1136 = vst.msk [vmem:[%s1134 + $0x8] sm:$0xff] %vm660, %v1124
        %1137 = vst.msk [vmem:[%s1134 + $0x10] sm:$0xff] %vm660, %v1128
        %1138 = vst.msk [vmem:[%s1134 + $0x18] sm:$0xff] %vm660, %v1132
        %s1139 = scalar_lea.vmem %s167, 32 [#allocation2]
        %v1140 = vld [vmem:[%s1139] sm:$0xff]
        %v1141 = vld [vmem:[%s1139 + $0x8] sm:$0xff]
        %v1142 = vld [vmem:[%s2] sm:$0xff]
        %v1143 = vld [vmem:[%s2 + $0x8] sm:$0xff]
        %v1145 = vsel %vm195, %v1140, 0
        %v1148 = vsel %vm195, %v1141, 0
        %1150 = vmatpush.msra.mxu0 0.0
        %1151 = vmatpush.msra.mxu0 0.0
        %1152 = vmatpush.msra.mxu0 0.0
        %1153 = vmatpush.msra.mxu0 0.0
        %1154 = vmatpush.msra.mxu0 0.0
        %1155 = vmatpush.msra.mxu0 0.0
        %1156 = vmatpush.msra.mxu0 0.0
        %1157 = vmatpush.msra.mxu0 0.0
        %1158 = vmatpush.msra.mxu0 0.0
        %1159 = vmatpush.msra.mxu0 0.0
        %1160 = vmatpush.msra.mxu0 0.0
        %1161 = vmatpush.msra.mxu0 0.0
        %1162 = vmatpush.msra.mxu0 0.0
        %1163 = vmatpush.msra.mxu0 0.0
        %v1164 = vand.u32 %v1143, 4294901760
        %1165 = vmatpush.msra.mxu0 %v1164
        %v1166 = vand.u32 %v1142, 4294901760
        %1167 = vmatpush.msra.mxu0 %v1166
        %v1168 = vand.u32 %v1145, 4294901760
        %v1169 = vsub.f32 %v1145, %v1168
        %v1170 = vand.u32 %v1169, 4294901760
        %v1171 = vsub.f32 %v1169, %v1170
        %v1172 = vand.u32 %v1171, 4294901760
        %1173 = vmatmul.f32.gmra.mxu0 %v1172
        %v1174 = vpop.f32.mrf.mxu0
        %v1175 = vadd.f32 0.0, %v1174
        %v1176 = vand.u32 %v1148, 4294901760
        %v1177 = vsub.f32 %v1148, %v1176
        %v1178 = vand.u32 %v1177, 4294901760
        %v1179 = vsub.f32 %v1177, %v1178
        %v1180 = vand.u32 %v1179, 4294901760
        %1181 = vmatmul.f32.gmra.mxu0 %v1180
        %v1182 = vpop.f32.mrf.mxu0
        %v1183 = vadd.f32 0.0, %v1182
        %1184 = vdwg.mxu0
        %1185 = vmatpush.msra.mxu0 0.0
        %1186 = vmatpush.msra.mxu0 0.0
        %1187 = vmatpush.msra.mxu0 0.0
        %1188 = vmatpush.msra.mxu0 0.0
        %1189 = vmatpush.msra.mxu0 0.0
        %1190 = vmatpush.msra.mxu0 0.0
        %1191 = vmatpush.msra.mxu0 0.0
        %1192 = vmatpush.msra.mxu0 0.0
        %1193 = vmatpush.msra.mxu0 0.0
        %1194 = vmatpush.msra.mxu0 0.0
        %1195 = vmatpush.msra.mxu0 0.0
        %1196 = vmatpush.msra.mxu0 0.0
        %1197 = vmatpush.msra.mxu0 0.0
        %1198 = vmatpush.msra.mxu0 0.0
        %v1199 = vand.u32 %v1143, 4294901760
        %v1200 = vsub.f32 %v1143, %v1199
        %v1201 = vand.u32 %v1200, 4294901760
        %v1202 = vsub.f32 %v1200, %v1201
        %v1203 = vand.u32 %v1202, 4294901760
        %1204 = vmatpush.msra.mxu0 %v1203
        %v1205 = vand.u32 %v1142, 4294901760
        %v1206 = vsub.f32 %v1142, %v1205
        %v1207 = vand.u32 %v1206, 4294901760
        %v1208 = vsub.f32 %v1206, %v1207
        %v1209 = vand.u32 %v1208, 4294901760
        %1210 = vmatpush.msra.mxu0 %v1209
        %v1211 = vand.u32 %v1145, 4294901760
        %1212 = vmatmul.f32.gmra.mxu0 %v1211
        %v1213 = vpop.f32.mrf.mxu0
        %v1214 = vadd.f32 %v1175, %v1213
        %v1215 = vand.u32 %v1148, 4294901760
        %1216 = vmatmul.f32.gmra.mxu0 %v1215
        %v1217 = vpop.f32.mrf.mxu0
        %v1218 = vadd.f32 %v1183, %v1217
        %1219 = vdwg.mxu0
        %1220 = vmatpush.msra.mxu0 0.0
        %1221 = vmatpush.msra.mxu0 0.0
        %1222 = vmatpush.msra.mxu0 0.0
        %1223 = vmatpush.msra.mxu0 0.0
        %1224 = vmatpush.msra.mxu0 0.0
        %1225 = vmatpush.msra.mxu0 0.0
        %1226 = vmatpush.msra.mxu0 0.0
        %1227 = vmatpush.msra.mxu0 0.0
        %1228 = vmatpush.msra.mxu0 0.0
        %1229 = vmatpush.msra.mxu0 0.0
        %1230 = vmatpush.msra.mxu0 0.0
        %1231 = vmatpush.msra.mxu0 0.0
        %1232 = vmatpush.msra.mxu0 0.0
        %1233 = vmatpush.msra.mxu0 0.0
        %v1234 = vand.u32 %v1143, 4294901760
        %v1235 = vsub.f32 %v1143, %v1234
        %1236 = vmatpush.msra.mxu0 %v1235
        %v1237 = vand.u32 %v1142, 4294901760
        %v1238 = vsub.f32 %v1142, %v1237
        %1239 = vmatpush.msra.mxu0 %v1238
        %v1240 = vand.u32 %v1145, 4294901760
        %v1241 = vsub.f32 %v1145, %v1240
        %1242 = vmatmul.f32.gmra.mxu0 %v1241
        %v1243 = vpop.f32.mrf.mxu0
        %v1244 = vadd.f32 %v1214, %v1243
        %v1245 = vand.u32 %v1148, 4294901760
        %v1246 = vsub.f32 %v1148, %v1245
        %1247 = vmatmul.f32.gmra.mxu0 %v1246
        %v1248 = vpop.f32.mrf.mxu0
        %v1249 = vadd.f32 %v1218, %v1248
        %1250 = vdwg.mxu0
        %1251 = vmatpush.msra.mxu0 0.0
        %1252 = vmatpush.msra.mxu0 0.0
        %1253 = vmatpush.msra.mxu0 0.0
        %1254 = vmatpush.msra.mxu0 0.0
        %1255 = vmatpush.msra.mxu0 0.0
        %1256 = vmatpush.msra.mxu0 0.0
        %1257 = vmatpush.msra.mxu0 0.0
        %1258 = vmatpush.msra.mxu0 0.0
        %1259 = vmatpush.msra.mxu0 0.0
        %1260 = vmatpush.msra.mxu0 0.0
        %1261 = vmatpush.msra.mxu0 0.0
        %1262 = vmatpush.msra.mxu0 0.0
        %1263 = vmatpush.msra.mxu0 0.0
        %1264 = vmatpush.msra.mxu0 0.0
        %v1265 = vand.u32 %v1143, 4294901760
        %1266 = vmatpush.msra.mxu0 %v1265
        %v1267 = vand.u32 %v1142, 4294901760
        %1268 = vmatpush.msra.mxu0 %v1267
        %v1269 = vand.u32 %v1145, 4294901760
        %v1270 = vsub.f32 %v1145, %v1269
        %v1271 = vand.u32 %v1270, 4294901760
        %1272 = vmatmul.f32.gmra.mxu0 %v1271
        %v1273 = vpop.f32.mrf.mxu0
        %v1274 = vadd.f32 %v1244, %v1273
        %v1275 = vand.u32 %v1148, 4294901760
        %v1276 = vsub.f32 %v1148, %v1275
        %v1277 = vand.u32 %v1276, 4294901760
        %1278 = vmatmul.f32.gmra.mxu0 %v1277
        %v1279 = vpop.f32.mrf.mxu0
        %v1280 = vadd.f32 %v1249, %v1279
        %1281 = vdwg.mxu0
        %1282 = vmatpush.msra.mxu0 0.0
        %1283 = vmatpush.msra.mxu0 0.0
        %1284 = vmatpush.msra.mxu0 0.0
        %1285 = vmatpush.msra.mxu0 0.0
        %1286 = vmatpush.msra.mxu0 0.0
        %1287 = vmatpush.msra.mxu0 0.0
        %1288 = vmatpush.msra.mxu0 0.0
        %1289 = vmatpush.msra.mxu0 0.0
        %1290 = vmatpush.msra.mxu0 0.0
        %1291 = vmatpush.msra.mxu0 0.0
        %1292 = vmatpush.msra.mxu0 0.0
        %1293 = vmatpush.msra.mxu0 0.0
        %1294 = vmatpush.msra.mxu0 0.0
        %1295 = vmatpush.msra.mxu0 0.0
        %v1296 = vand.u32 %v1143, 4294901760
        %v1297 = vsub.f32 %v1143, %v1296
        %v1298 = vand.u32 %v1297, 4294901760
        %1299 = vmatpush.msra.mxu0 %v1298
        %v1300 = vand.u32 %v1142, 4294901760
        %v1301 = vsub.f32 %v1142, %v1300
        %v1302 = vand.u32 %v1301, 4294901760
        %1303 = vmatpush.msra.mxu0 %v1302
        %v1304 = vand.u32 %v1145, 4294901760
        %1305 = vmatmul.f32.gmra.mxu0 %v1304
        %v1306 = vpop.f32.mrf.mxu0
        %v1307 = vadd.f32 %v1274, %v1306
        %v1308 = vand.u32 %v1148, 4294901760
        %1309 = vmatmul.f32.gmra.mxu0 %v1308
        %v1310 = vpop.f32.mrf.mxu0
        %v1311 = vadd.f32 %v1280, %v1310
        %1312 = vdwg.mxu0
        %1313 = vmatpush.msra.mxu0 0.0
        %1314 = vmatpush.msra.mxu0 0.0
        %1315 = vmatpush.msra.mxu0 0.0
        %1316 = vmatpush.msra.mxu0 0.0
        %1317 = vmatpush.msra.mxu0 0.0
        %1318 = vmatpush.msra.mxu0 0.0
        %1319 = vmatpush.msra.mxu0 0.0
        %1320 = vmatpush.msra.mxu0 0.0
        %1321 = vmatpush.msra.mxu0 0.0
        %1322 = vmatpush.msra.mxu0 0.0
        %1323 = vmatpush.msra.mxu0 0.0
        %1324 = vmatpush.msra.mxu0 0.0
        %1325 = vmatpush.msra.mxu0 0.0
        %1326 = vmatpush.msra.mxu0 0.0
        %v1327 = vand.u32 %v1143, 4294901760
        %1328 = vmatpush.msra.mxu0 %v1327
        %v1329 = vand.u32 %v1142, 4294901760
        %1330 = vmatpush.msra.mxu0 %v1329
        %v1331 = vand.u32 %v1145, 4294901760
        %1332 = vmatmul.f32.gmra.mxu0 %v1331
        %v1333 = vpop.f32.mrf.mxu0
        %v1334 = vadd.f32 %v1307, %v1333
        %v1335 = vand.u32 %v1148, 4294901760
        %1336 = vmatmul.f32.gmra.mxu0 %v1335
        %v1337 = vpop.f32.mrf.mxu0
        %v1338 = vadd.f32 %v1311, %v1337
        %1339 = vdwg.mxu0
        %v1340 = vld [vmem:[%s1] sm:$0xff]
        %v1341 = vld [vmem:[%s1 + $0x8] sm:$0xff]
        %v1342 = vld [vmem:[%s1 + $0x10] sm:$0xff]
        %v1343 = vld [vmem:[%s1 + $0x18] sm:$0xff]
        %v1345 = vsel %vm195, %v1340, 0
        %v1348 = vsel %vm195, %v1341, 0
        %v1351 = vsel %vm195, %v1342, 0
        %v1354 = vsel %vm195, %v1343, 0
        %1356 = vmatpush.msra.mxu0 0.0
        %1357 = vmatpush.msra.mxu0 0.0
        %1358 = vmatpush.msra.mxu0 0.0
        %1359 = vmatpush.msra.mxu0 0.0
        %1360 = vmatpush.msra.mxu0 0.0
        %1361 = vmatpush.msra.mxu0 0.0
        %1362 = vmatpush.msra.mxu0 0.0
        %1363 = vmatpush.msra.mxu0 0.0
        %1364 = vmatpush.msra.mxu0 0.0
        %1365 = vmatpush.msra.mxu0 0.0
        %1366 = vmatpush.msra.mxu0 0.0
        %1367 = vmatpush.msra.mxu0 0.0
        %1368 = vmatpush.msra.mxu0 0.0
        %1369 = vmatpush.msra.mxu0 0.0
        %v1370 = vand.u32 %v1338, 4294901760
        %1371 = vmatpush.msra.mxu0 %v1370
        %v1372 = vand.u32 %v1334, 4294901760
        %1373 = vmatpush.msra.mxu0 %v1372
        %v1374 = vand.u32 %v1345, 4294901760
        %v1375 = vsub.f32 %v1345, %v1374
        %v1376 = vand.u32 %v1375, 4294901760
        %v1377 = vsub.f32 %v1375, %v1376
        %v1378 = vand.u32 %v1377, 4294901760
        %1379 = vmatmul.f32.gmra.mxu0 %v1378
        %v1380 = vpop.f32.mrf.mxu0
        %v1381 = vadd.f32 0.0, %v1380
        %v1382 = vand.u32 %v1348, 4294901760
        %v1383 = vsub.f32 %v1348, %v1382
        %v1384 = vand.u32 %v1383, 4294901760
        %v1385 = vsub.f32 %v1383, %v1384
        %v1386 = vand.u32 %v1385, 4294901760
        %1387 = vmatmul.f32.gmra.mxu0 %v1386
        %v1388 = vpop.f32.mrf.mxu0
        %v1389 = vadd.f32 0.0, %v1388
        %v1390 = vand.u32 %v1351, 4294901760
        %v1391 = vsub.f32 %v1351, %v1390
        %v1392 = vand.u32 %v1391, 4294901760
        %v1393 = vsub.f32 %v1391, %v1392
        %v1394 = vand.u32 %v1393, 4294901760
        %1395 = vmatmul.f32.gmra.mxu0 %v1394
        %v1396 = vpop.f32.mrf.mxu0
        %v1397 = vadd.f32 0.0, %v1396
        %v1398 = vand.u32 %v1354, 4294901760
        %v1399 = vsub.f32 %v1354, %v1398
        %v1400 = vand.u32 %v1399, 4294901760
        %v1401 = vsub.f32 %v1399, %v1400
        %v1402 = vand.u32 %v1401, 4294901760
        %1403 = vmatmul.f32.gmra.mxu0 %v1402
        %v1404 = vpop.f32.mrf.mxu0
        %v1405 = vadd.f32 0.0, %v1404
        %1406 = vdwg.mxu0
        %1407 = vmatpush.msra.mxu0 0.0
        %1408 = vmatpush.msra.mxu0 0.0
        %1409 = vmatpush.msra.mxu0 0.0
        %1410 = vmatpush.msra.mxu0 0.0
        %1411 = vmatpush.msra.mxu0 0.0
        %1412 = vmatpush.msra.mxu0 0.0
        %1413 = vmatpush.msra.mxu0 0.0
        %1414 = vmatpush.msra.mxu0 0.0
        %1415 = vmatpush.msra.mxu0 0.0
        %1416 = vmatpush.msra.mxu0 0.0
        %1417 = vmatpush.msra.mxu0 0.0
        %1418 = vmatpush.msra.mxu0 0.0
        %1419 = vmatpush.msra.mxu0 0.0
        %1420 = vmatpush.msra.mxu0 0.0
        %v1421 = vand.u32 %v1338, 4294901760
        %v1422 = vsub.f32 %v1338, %v1421
        %v1423 = vand.u32 %v1422, 4294901760
        %v1424 = vsub.f32 %v1422, %v1423
        %v1425 = vand.u32 %v1424, 4294901760
        %1426 = vmatpush.msra.mxu0 %v1425
        %v1427 = vand.u32 %v1334, 4294901760
        %v1428 = vsub.f32 %v1334, %v1427
        %v1429 = vand.u32 %v1428, 4294901760
        %v1430 = vsub.f32 %v1428, %v1429
        %v1431 = vand.u32 %v1430, 4294901760
        %1432 = vmatpush.msra.mxu0 %v1431
        %v1433 = vand.u32 %v1345, 4294901760
        %1434 = vmatmul.f32.gmra.mxu0 %v1433
        %v1435 = vpop.f32.mrf.mxu0
        %v1436 = vadd.f32 %v1381, %v1435
        %v1437 = vand.u32 %v1348, 4294901760
        %1438 = vmatmul.f32.gmra.mxu0 %v1437
        %v1439 = vpop.f32.mrf.mxu0
        %v1440 = vadd.f32 %v1389, %v1439
        %v1441 = vand.u32 %v1351, 4294901760
        %1442 = vmatmul.f32.gmra.mxu0 %v1441
        %v1443 = vpop.f32.mrf.mxu0
        %v1444 = vadd.f32 %v1397, %v1443
        %v1445 = vand.u32 %v1354, 4294901760
        %1446 = vmatmul.f32.gmra.mxu0 %v1445
        %v1447 = vpop.f32.mrf.mxu0
        %v1448 = vadd.f32 %v1405, %v1447
        %1449 = vdwg.mxu0
        %1450 = vmatpush.msra.mxu0 0.0
        %1451 = vmatpush.msra.mxu0 0.0
        %1452 = vmatpush.msra.mxu0 0.0
        %1453 = vmatpush.msra.mxu0 0.0
        %1454 = vmatpush.msra.mxu0 0.0
        %1455 = vmatpush.msra.mxu0 0.0
        %1456 = vmatpush.msra.mxu0 0.0
        %1457 = vmatpush.msra.mxu0 0.0
        %1458 = vmatpush.msra.mxu0 0.0
        %1459 = vmatpush.msra.mxu0 0.0
        %1460 = vmatpush.msra.mxu0 0.0
        %1461 = vmatpush.msra.mxu0 0.0
        %1462 = vmatpush.msra.mxu0 0.0
        %1463 = vmatpush.msra.mxu0 0.0
        %v1464 = vand.u32 %v1338, 4294901760
        %v1465 = vsub.f32 %v1338, %v1464
        %1466 = vmatpush.msra.mxu0 %v1465
        %v1467 = vand.u32 %v1334, 4294901760
        %v1468 = vsub.f32 %v1334, %v1467
        %1469 = vmatpush.msra.mxu0 %v1468
        %v1470 = vand.u32 %v1345, 4294901760
        %v1471 = vsub.f32 %v1345, %v1470
        %1472 = vmatmul.f32.gmra.mxu0 %v1471
        %v1473 = vpop.f32.mrf.mxu0
        %v1474 = vadd.f32 %v1436, %v1473
        %v1475 = vand.u32 %v1348, 4294901760
        %v1476 = vsub.f32 %v1348, %v1475
        %1477 = vmatmul.f32.gmra.mxu0 %v1476
        %v1478 = vpop.f32.mrf.mxu0
        %v1479 = vadd.f32 %v1440, %v1478
        %v1480 = vand.u32 %v1351, 4294901760
        %v1481 = vsub.f32 %v1351, %v1480
        %1482 = vmatmul.f32.gmra.mxu0 %v1481
        %v1483 = vpop.f32.mrf.mxu0
        %v1484 = vadd.f32 %v1444, %v1483
        %v1485 = vand.u32 %v1354, 4294901760
        %v1486 = vsub.f32 %v1354, %v1485
        %1487 = vmatmul.f32.gmra.mxu0 %v1486
        %v1488 = vpop.f32.mrf.mxu0
        %v1489 = vadd.f32 %v1448, %v1488
        %1490 = vdwg.mxu0
        %1491 = vmatpush.msra.mxu0 0.0
        %1492 = vmatpush.msra.mxu0 0.0
        %1493 = vmatpush.msra.mxu0 0.0
        %1494 = vmatpush.msra.mxu0 0.0
        %1495 = vmatpush.msra.mxu0 0.0
        %1496 = vmatpush.msra.mxu0 0.0
        %1497 = vmatpush.msra.mxu0 0.0
        %1498 = vmatpush.msra.mxu0 0.0
        %1499 = vmatpush.msra.mxu0 0.0
        %1500 = vmatpush.msra.mxu0 0.0
        %1501 = vmatpush.msra.mxu0 0.0
        %1502 = vmatpush.msra.mxu0 0.0
        %1503 = vmatpush.msra.mxu0 0.0
        %1504 = vmatpush.msra.mxu0 0.0
        %v1505 = vand.u32 %v1338, 4294901760
        %1506 = vmatpush.msra.mxu0 %v1505
        %v1507 = vand.u32 %v1334, 4294901760
        %1508 = vmatpush.msra.mxu0 %v1507
        %v1509 = vand.u32 %v1345, 4294901760
        %v1510 = vsub.f32 %v1345, %v1509
        %v1511 = vand.u32 %v1510, 4294901760
        %1512 = vmatmul.f32.gmra.mxu0 %v1511
        %v1513 = vpop.f32.mrf.mxu0
        %v1514 = vadd.f32 %v1474, %v1513
        %v1515 = vand.u32 %v1348, 4294901760
        %v1516 = vsub.f32 %v1348, %v1515
        %v1517 = vand.u32 %v1516, 4294901760
        %1518 = vmatmul.f32.gmra.mxu0 %v1517
        %v1519 = vpop.f32.mrf.mxu0
        %v1520 = vadd.f32 %v1479, %v1519
        %v1521 = vand.u32 %v1351, 4294901760
        %v1522 = vsub.f32 %v1351, %v1521
        %v1523 = vand.u32 %v1522, 4294901760
        %1524 = vmatmul.f32.gmra.mxu0 %v1523
        %v1525 = vpop.f32.mrf.mxu0
        %v1526 = vadd.f32 %v1484, %v1525
        %v1527 = vand.u32 %v1354, 4294901760
        %v1528 = vsub.f32 %v1354, %v1527
        %v1529 = vand.u32 %v1528, 4294901760
        %1530 = vmatmul.f32.gmra.mxu0 %v1529
        %v1531 = vpop.f32.mrf.mxu0
        %v1532 = vadd.f32 %v1489, %v1531
        %1533 = vdwg.mxu0
        %1534 = vmatpush.msra.mxu0 0.0
        %1535 = vmatpush.msra.mxu0 0.0
        %1536 = vmatpush.msra.mxu0 0.0
        %1537 = vmatpush.msra.mxu0 0.0
        %1538 = vmatpush.msra.mxu0 0.0
        %1539 = vmatpush.msra.mxu0 0.0
        %1540 = vmatpush.msra.mxu0 0.0
        %1541 = vmatpush.msra.mxu0 0.0
        %1542 = vmatpush.msra.mxu0 0.0
        %1543 = vmatpush.msra.mxu0 0.0
        %1544 = vmatpush.msra.mxu0 0.0
        %1545 = vmatpush.msra.mxu0 0.0
        %1546 = vmatpush.msra.mxu0 0.0
        %1547 = vmatpush.msra.mxu0 0.0
        %v1548 = vand.u32 %v1338, 4294901760
        %v1549 = vsub.f32 %v1338, %v1548
        %v1550 = vand.u32 %v1549, 4294901760
        %1551 = vmatpush.msra.mxu0 %v1550
        %v1552 = vand.u32 %v1334, 4294901760
        %v1553 = vsub.f32 %v1334, %v1552
        %v1554 = vand.u32 %v1553, 4294901760
        %1555 = vmatpush.msra.mxu0 %v1554
        %v1556 = vand.u32 %v1345, 4294901760
        %1557 = vmatmul.f32.gmra.mxu0 %v1556
        %v1558 = vpop.f32.mrf.mxu0
        %v1559 = vadd.f32 %v1514, %v1558
        %v1560 = vand.u32 %v1348, 4294901760
        %1561 = vmatmul.f32.gmra.mxu0 %v1560
        %v1562 = vpop.f32.mrf.mxu0
        %v1563 = vadd.f32 %v1520, %v1562
        %v1564 = vand.u32 %v1351, 4294901760
        %1565 = vmatmul.f32.gmra.mxu0 %v1564
        %v1566 = vpop.f32.mrf.mxu0
        %v1567 = vadd.f32 %v1526, %v1566
        %v1568 = vand.u32 %v1354, 4294901760
        %1569 = vmatmul.f32.gmra.mxu0 %v1568
        %v1570 = vpop.f32.mrf.mxu0
        %v1571 = vadd.f32 %v1532, %v1570
        %1572 = vdwg.mxu0
        %1573 = vmatpush.msra.mxu0 0.0
        %1574 = vmatpush.msra.mxu0 0.0
        %1575 = vmatpush.msra.mxu0 0.0
        %1576 = vmatpush.msra.mxu0 0.0
        %1577 = vmatpush.msra.mxu0 0.0
        %1578 = vmatpush.msra.mxu0 0.0
        %1579 = vmatpush.msra.mxu0 0.0
        %1580 = vmatpush.msra.mxu0 0.0
        %1581 = vmatpush.msra.mxu0 0.0
        %1582 = vmatpush.msra.mxu0 0.0
        %1583 = vmatpush.msra.mxu0 0.0
        %1584 = vmatpush.msra.mxu0 0.0
        %1585 = vmatpush.msra.mxu0 0.0
        %1586 = vmatpush.msra.mxu0 0.0
        %v1587 = vand.u32 %v1338, 4294901760
        %1588 = vmatpush.msra.mxu0 %v1587
        %v1589 = vand.u32 %v1334, 4294901760
        %1590 = vmatpush.msra.mxu0 %v1589
        %v1591 = vand.u32 %v1345, 4294901760
        %1592 = vmatmul.f32.gmra.mxu0 %v1591
        %v1593 = vpop.f32.mrf.mxu0
        %v1594 = vadd.f32 %v1559, %v1593
        %v1595 = vand.u32 %v1348, 4294901760
        %1596 = vmatmul.f32.gmra.mxu0 %v1595
        %v1597 = vpop.f32.mrf.mxu0
        %v1598 = vadd.f32 %v1563, %v1597
        %v1599 = vand.u32 %v1351, 4294901760
        %1600 = vmatmul.f32.gmra.mxu0 %v1599
        %v1601 = vpop.f32.mrf.mxu0
        %v1602 = vadd.f32 %v1567, %v1601
        %v1603 = vand.u32 %v1354, 4294901760
        %1604 = vmatmul.f32.gmra.mxu0 %v1603
        %v1605 = vpop.f32.mrf.mxu0
        %v1606 = vadd.f32 %v1571, %v1605
        %1607 = vdwg.mxu0
        %s1608 = scalar_lea.vmem %s190, 64 [#allocation5]
        %1609 = vst.msk [vmem:[%s1608] sm:$0xff] %vm660, %v1594
        %1610 = vst.msk [vmem:[%s1608 + $0x8] sm:$0xff] %vm660, %v1598
        %1611 = vst.msk [vmem:[%s1608 + $0x10] sm:$0xff] %vm660, %v1602
        %1612 = vst.msk [vmem:[%s1608 + $0x18] sm:$0xff] %vm660, %v1606
        %s1613 = scalar_lea.vmem %s167, 48 [#allocation2]
        %v1614 = vld [vmem:[%s1613] sm:$0xff]
        %v1615 = vld [vmem:[%s1613 + $0x8] sm:$0xff]
        %v1616 = vld [vmem:[%s2] sm:$0xff]
        %v1617 = vld [vmem:[%s2 + $0x8] sm:$0xff]
        %v1619 = vsel %vm195, %v1614, 0
        %v1622 = vsel %vm195, %v1615, 0
        %1624 = vmatpush.msra.mxu0 0.0
        %1625 = vmatpush.msra.mxu0 0.0
        %1626 = vmatpush.msra.mxu0 0.0
        %1627 = vmatpush.msra.mxu0 0.0
        %1628 = vmatpush.msra.mxu0 0.0
        %1629 = vmatpush.msra.mxu0 0.0
        %1630 = vmatpush.msra.mxu0 0.0
        %1631 = vmatpush.msra.mxu0 0.0
        %1632 = vmatpush.msra.mxu0 0.0
        %1633 = vmatpush.msra.mxu0 0.0
        %1634 = vmatpush.msra.mxu0 0.0
        %1635 = vmatpush.msra.mxu0 0.0
        %1636 = vmatpush.msra.mxu0 0.0
        %1637 = vmatpush.msra.mxu0 0.0
        %v1638 = vand.u32 %v1617, 4294901760
        %1639 = vmatpush.msra.mxu0 %v1638
        %v1640 = vand.u32 %v1616, 4294901760
        %1641 = vmatpush.msra.mxu0 %v1640
        %v1642 = vand.u32 %v1619, 4294901760
        %v1643 = vsub.f32 %v1619, %v1642
        %v1644 = vand.u32 %v1643, 4294901760
        %v1645 = vsub.f32 %v1643, %v1644
        %v1646 = vand.u32 %v1645, 4294901760
        %1647 = vmatmul.f32.gmra.mxu0 %v1646
        %v1648 = vpop.f32.mrf.mxu0
        %v1649 = vadd.f32 0.0, %v1648
        %v1650 = vand.u32 %v1622, 4294901760
        %v1651 = vsub.f32 %v1622, %v1650
        %v1652 = vand.u32 %v1651, 4294901760
        %v1653 = vsub.f32 %v1651, %v1652
        %v1654 = vand.u32 %v1653, 4294901760
        %1655 = vmatmul.f32.gmra.mxu0 %v1654
        %v1656 = vpop.f32.mrf.mxu0
        %v1657 = vadd.f32 0.0, %v1656
        %1658 = vdwg.mxu0
        %1659 = vmatpush.msra.mxu0 0.0
        %1660 = vmatpush.msra.mxu0 0.0
        %1661 = vmatpush.msra.mxu0 0.0
        %1662 = vmatpush.msra.mxu0 0.0
        %1663 = vmatpush.msra.mxu0 0.0
        %1664 = vmatpush.msra.mxu0 0.0
        %1665 = vmatpush.msra.mxu0 0.0
        %1666 = vmatpush.msra.mxu0 0.0
        %1667 = vmatpush.msra.mxu0 0.0
        %1668 = vmatpush.msra.mxu0 0.0
        %1669 = vmatpush.msra.mxu0 0.0
        %1670 = vmatpush.msra.mxu0 0.0
        %1671 = vmatpush.msra.mxu0 0.0
        %1672 = vmatpush.msra.mxu0 0.0
        %v1673 = vand.u32 %v1617, 4294901760
        %v1674 = vsub.f32 %v1617, %v1673
        %v1675 = vand.u32 %v1674, 4294901760
        %v1676 = vsub.f32 %v1674, %v1675
        %v1677 = vand.u32 %v1676, 4294901760
        %1678 = vmatpush.msra.mxu0 %v1677
        %v1679 = vand.u32 %v1616, 4294901760
        %v1680 = vsub.f32 %v1616, %v1679
        %v1681 = vand.u32 %v1680, 4294901760
        %v1682 = vsub.f32 %v1680, %v1681
        %v1683 = vand.u32 %v1682, 4294901760
        %1684 = vmatpush.msra.mxu0 %v1683
        %v1685 = vand.u32 %v1619, 4294901760
        %1686 = vmatmul.f32.gmra.mxu0 %v1685
        %v1687 = vpop.f32.mrf.mxu0
        %v1688 = vadd.f32 %v1649, %v1687
        %v1689 = vand.u32 %v1622, 4294901760
        %1690 = vmatmul.f32.gmra.mxu0 %v1689
        %v1691 = vpop.f32.mrf.mxu0
        %v1692 = vadd.f32 %v1657, %v1691
        %1693 = vdwg.mxu0
        %1694 = vmatpush.msra.mxu0 0.0
        %1695 = vmatpush.msra.mxu0 0.0
        %1696 = vmatpush.msra.mxu0 0.0
        %1697 = vmatpush.msra.mxu0 0.0
        %1698 = vmatpush.msra.mxu0 0.0
        %1699 = vmatpush.msra.mxu0 0.0
        %1700 = vmatpush.msra.mxu0 0.0
        %1701 = vmatpush.msra.mxu0 0.0
        %1702 = vmatpush.msra.mxu0 0.0
        %1703 = vmatpush.msra.mxu0 0.0
        %1704 = vmatpush.msra.mxu0 0.0
        %1705 = vmatpush.msra.mxu0 0.0
        %1706 = vmatpush.msra.mxu0 0.0
        %1707 = vmatpush.msra.mxu0 0.0
        %v1708 = vand.u32 %v1617, 4294901760
        %v1709 = vsub.f32 %v1617, %v1708
        %1710 = vmatpush.msra.mxu0 %v1709
        %v1711 = vand.u32 %v1616, 4294901760
        %v1712 = vsub.f32 %v1616, %v1711
        %1713 = vmatpush.msra.mxu0 %v1712
        %v1714 = vand.u32 %v1619, 4294901760
        %v1715 = vsub.f32 %v1619, %v1714
        %1716 = vmatmul.f32.gmra.mxu0 %v1715
        %v1717 = vpop.f32.mrf.mxu0
        %v1718 = vadd.f32 %v1688, %v1717
        %v1719 = vand.u32 %v1622, 4294901760
        %v1720 = vsub.f32 %v1622, %v1719
        %1721 = vmatmul.f32.gmra.mxu0 %v1720
        %v1722 = vpop.f32.mrf.mxu0
        %v1723 = vadd.f32 %v1692, %v1722
        %1724 = vdwg.mxu0
        %1725 = vmatpush.msra.mxu0 0.0
        %1726 = vmatpush.msra.mxu0 0.0
        %1727 = vmatpush.msra.mxu0 0.0
        %1728 = vmatpush.msra.mxu0 0.0
        %1729 = vmatpush.msra.mxu0 0.0
        %1730 = vmatpush.msra.mxu0 0.0
        %1731 = vmatpush.msra.mxu0 0.0
        %1732 = vmatpush.msra.mxu0 0.0
        %1733 = vmatpush.msra.mxu0 0.0
        %1734 = vmatpush.msra.mxu0 0.0
        %1735 = vmatpush.msra.mxu0 0.0
        %1736 = vmatpush.msra.mxu0 0.0
        %1737 = vmatpush.msra.mxu0 0.0
        %1738 = vmatpush.msra.mxu0 0.0
        %v1739 = vand.u32 %v1617, 4294901760
        %1740 = vmatpush.msra.mxu0 %v1739
        %v1741 = vand.u32 %v1616, 4294901760
        %1742 = vmatpush.msra.mxu0 %v1741
        %v1743 = vand.u32 %v1619, 4294901760
        %v1744 = vsub.f32 %v1619, %v1743
        %v1745 = vand.u32 %v1744, 4294901760
        %1746 = vmatmul.f32.gmra.mxu0 %v1745
        %v1747 = vpop.f32.mrf.mxu0
        %v1748 = vadd.f32 %v1718, %v1747
        %v1749 = vand.u32 %v1622, 4294901760
        %v1750 = vsub.f32 %v1622, %v1749
        %v1751 = vand.u32 %v1750, 4294901760
        %1752 = vmatmul.f32.gmra.mxu0 %v1751
        %v1753 = vpop.f32.mrf.mxu0
        %v1754 = vadd.f32 %v1723, %v1753
        %1755 = vdwg.mxu0
        %1756 = vmatpush.msra.mxu0 0.0
        %1757 = vmatpush.msra.mxu0 0.0
        %1758 = vmatpush.msra.mxu0 0.0
        %1759 = vmatpush.msra.mxu0 0.0
        %1760 = vmatpush.msra.mxu0 0.0
        %1761 = vmatpush.msra.mxu0 0.0
        %1762 = vmatpush.msra.mxu0 0.0
        %1763 = vmatpush.msra.mxu0 0.0
        %1764 = vmatpush.msra.mxu0 0.0
        %1765 = vmatpush.msra.mxu0 0.0
        %1766 = vmatpush.msra.mxu0 0.0
        %1767 = vmatpush.msra.mxu0 0.0
        %1768 = vmatpush.msra.mxu0 0.0
        %1769 = vmatpush.msra.mxu0 0.0
        %v1770 = vand.u32 %v1617, 4294901760
        %v1771 = vsub.f32 %v1617, %v1770
        %v1772 = vand.u32 %v1771, 4294901760
        %1773 = vmatpush.msra.mxu0 %v1772
        %v1774 = vand.u32 %v1616, 4294901760
        %v1775 = vsub.f32 %v1616, %v1774
        %v1776 = vand.u32 %v1775, 4294901760
        %1777 = vmatpush.msra.mxu0 %v1776
        %v1778 = vand.u32 %v1619, 4294901760
        %1779 = vmatmul.f32.gmra.mxu0 %v1778
        %v1780 = vpop.f32.mrf.mxu0
        %v1781 = vadd.f32 %v1748, %v1780
        %v1782 = vand.u32 %v1622, 4294901760
        %1783 = vmatmul.f32.gmra.mxu0 %v1782
        %v1784 = vpop.f32.mrf.mxu0
        %v1785 = vadd.f32 %v1754, %v1784
        %1786 = vdwg.mxu0
        %1787 = vmatpush.msra.mxu0 0.0
        %1788 = vmatpush.msra.mxu0 0.0
        %1789 = vmatpush.msra.mxu0 0.0
        %1790 = vmatpush.msra.mxu0 0.0
        %1791 = vmatpush.msra.mxu0 0.0
        %1792 = vmatpush.msra.mxu0 0.0
        %1793 = vmatpush.msra.mxu0 0.0
        %1794 = vmatpush.msra.mxu0 0.0
        %1795 = vmatpush.msra.mxu0 0.0
        %1796 = vmatpush.msra.mxu0 0.0
        %1797 = vmatpush.msra.mxu0 0.0
        %1798 = vmatpush.msra.mxu0 0.0
        %1799 = vmatpush.msra.mxu0 0.0
        %1800 = vmatpush.msra.mxu0 0.0
        %v1801 = vand.u32 %v1617, 4294901760
        %1802 = vmatpush.msra.mxu0 %v1801
        %v1803 = vand.u32 %v1616, 4294901760
        %1804 = vmatpush.msra.mxu0 %v1803
        %v1805 = vand.u32 %v1619, 4294901760
        %1806 = vmatmul.f32.gmra.mxu0 %v1805
        %v1807 = vpop.f32.mrf.mxu0
        %v1808 = vadd.f32 %v1781, %v1807
        %v1809 = vand.u32 %v1622, 4294901760
        %1810 = vmatmul.f32.gmra.mxu0 %v1809
        %v1811 = vpop.f32.mrf.mxu0
        %v1812 = vadd.f32 %v1785, %v1811
        %1813 = vdwg.mxu0
        %v1814 = vld [vmem:[%s1] sm:$0xff]
        %v1815 = vld [vmem:[%s1 + $0x8] sm:$0xff]
        %v1816 = vld [vmem:[%s1 + $0x10] sm:$0xff]
        %v1817 = vld [vmem:[%s1 + $0x18] sm:$0xff]
        %v1819 = vsel %vm195, %v1814, 0
        %v1822 = vsel %vm195, %v1815, 0
        %v1825 = vsel %vm195, %v1816, 0
        %v1828 = vsel %vm195, %v1817, 0
        %1830 = vmatpush.msra.mxu0 0.0
        %1831 = vmatpush.msra.mxu0 0.0
        %1832 = vmatpush.msra.mxu0 0.0
        %1833 = vmatpush.msra.mxu0 0.0
        %1834 = vmatpush.msra.mxu0 0.0
        %1835 = vmatpush.msra.mxu0 0.0
        %1836 = vmatpush.msra.mxu0 0.0
        %1837 = vmatpush.msra.mxu0 0.0
        %1838 = vmatpush.msra.mxu0 0.0
        %1839 = vmatpush.msra.mxu0 0.0
        %1840 = vmatpush.msra.mxu0 0.0
        %1841 = vmatpush.msra.mxu0 0.0
        %1842 = vmatpush.msra.mxu0 0.0
        %1843 = vmatpush.msra.mxu0 0.0
        %v1844 = vand.u32 %v1812, 4294901760
        %1845 = vmatpush.msra.mxu0 %v1844
        %v1846 = vand.u32 %v1808, 4294901760
        %1847 = vmatpush.msra.mxu0 %v1846
        %v1848 = vand.u32 %v1819, 4294901760
        %v1849 = vsub.f32 %v1819, %v1848
        %v1850 = vand.u32 %v1849, 4294901760
        %v1851 = vsub.f32 %v1849, %v1850
        %v1852 = vand.u32 %v1851, 4294901760
        %1853 = vmatmul.f32.gmra.mxu0 %v1852
        %v1854 = vpop.f32.mrf.mxu0
        %v1855 = vadd.f32 0.0, %v1854
        %v1856 = vand.u32 %v1822, 4294901760
        %v1857 = vsub.f32 %v1822, %v1856
        %v1858 = vand.u32 %v1857, 4294901760
        %v1859 = vsub.f32 %v1857, %v1858
        %v1860 = vand.u32 %v1859, 4294901760
        %1861 = vmatmul.f32.gmra.mxu0 %v1860
        %v1862 = vpop.f32.mrf.mxu0
        %v1863 = vadd.f32 0.0, %v1862
        %v1864 = vand.u32 %v1825, 4294901760
        %v1865 = vsub.f32 %v1825, %v1864
        %v1866 = vand.u32 %v1865, 4294901760
        %v1867 = vsub.f32 %v1865, %v1866
        %v1868 = vand.u32 %v1867, 4294901760
        %1869 = vmatmul.f32.gmra.mxu0 %v1868
        %v1870 = vpop.f32.mrf.mxu0
        %v1871 = vadd.f32 0.0, %v1870
        %v1872 = vand.u32 %v1828, 4294901760
        %v1873 = vsub.f32 %v1828, %v1872
        %v1874 = vand.u32 %v1873, 4294901760
        %v1875 = vsub.f32 %v1873, %v1874
        %v1876 = vand.u32 %v1875, 4294901760
        %1877 = vmatmul.f32.gmra.mxu0 %v1876
        %v1878 = vpop.f32.mrf.mxu0
        %v1879 = vadd.f32 0.0, %v1878
        %1880 = vdwg.mxu0
        %1881 = vmatpush.msra.mxu0 0.0
        %1882 = vmatpush.msra.mxu0 0.0
        %1883 = vmatpush.msra.mxu0 0.0
        %1884 = vmatpush.msra.mxu0 0.0
        %1885 = vmatpush.msra.mxu0 0.0
        %1886 = vmatpush.msra.mxu0 0.0
        %1887 = vmatpush.msra.mxu0 0.0
        %1888 = vmatpush.msra.mxu0 0.0
        %1889 = vmatpush.msra.mxu0 0.0
        %1890 = vmatpush.msra.mxu0 0.0
        %1891 = vmatpush.msra.mxu0 0.0
        %1892 = vmatpush.msra.mxu0 0.0
        %1893 = vmatpush.msra.mxu0 0.0
        %1894 = vmatpush.msra.mxu0 0.0
        %v1895 = vand.u32 %v1812, 4294901760
        %v1896 = vsub.f32 %v1812, %v1895
        %v1897 = vand.u32 %v1896, 4294901760
        %v1898 = vsub.f32 %v1896, %v1897
        %v1899 = vand.u32 %v1898, 4294901760
        %1900 = vmatpush.msra.mxu0 %v1899
        %v1901 = vand.u32 %v1808, 4294901760
        %v1902 = vsub.f32 %v1808, %v1901
        %v1903 = vand.u32 %v1902, 4294901760
        %v1904 = vsub.f32 %v1902, %v1903
        %v1905 = vand.u32 %v1904, 4294901760
        %1906 = vmatpush.msra.mxu0 %v1905
        %v1907 = vand.u32 %v1819, 4294901760
        %1908 = vmatmul.f32.gmra.mxu0 %v1907
        %v1909 = vpop.f32.mrf.mxu0
        %v1910 = vadd.f32 %v1855, %v1909
        %v1911 = vand.u32 %v1822, 4294901760
        %1912 = vmatmul.f32.gmra.mxu0 %v1911
        %v1913 = vpop.f32.mrf.mxu0
        %v1914 = vadd.f32 %v1863, %v1913
        %v1915 = vand.u32 %v1825, 4294901760
        %1916 = vmatmul.f32.gmra.mxu0 %v1915
        %v1917 = vpop.f32.mrf.mxu0
        %v1918 = vadd.f32 %v1871, %v1917
        %v1919 = vand.u32 %v1828, 4294901760
        %1920 = vmatmul.f32.gmra.mxu0 %v1919
        %v1921 = vpop.f32.mrf.mxu0
        %v1922 = vadd.f32 %v1879, %v1921
        %1923 = vdwg.mxu0
        %1924 = vmatpush.msra.mxu0 0.0
        %1925 = vmatpush.msra.mxu0 0.0
        %1926 = vmatpush.msra.mxu0 0.0
        %1927 = vmatpush.msra.mxu0 0.0
        %1928 = vmatpush.msra.mxu0 0.0
        %1929 = vmatpush.msra.mxu0 0.0
        %1930 = vmatpush.msra.mxu0 0.0
        %1931 = vmatpush.msra.mxu0 0.0
        %1932 = vmatpush.msra.mxu0 0.0
        %1933 = vmatpush.msra.mxu0 0.0
        %1934 = vmatpush.msra.mxu0 0.0
        %1935 = vmatpush.msra.mxu0 0.0
        %1936 = vmatpush.msra.mxu0 0.0
        %1937 = vmatpush.msra.mxu0 0.0
        %v1938 = vand.u32 %v1812, 4294901760
        %v1939 = vsub.f32 %v1812, %v1938
        %1940 = vmatpush.msra.mxu0 %v1939
        %v1941 = vand.u32 %v1808, 4294901760
        %v1942 = vsub.f32 %v1808, %v1941
        %1943 = vmatpush.msra.mxu0 %v1942
        %v1944 = vand.u32 %v1819, 4294901760
        %v1945 = vsub.f32 %v1819, %v1944
        %1946 = vmatmul.f32.gmra.mxu0 %v1945
        %v1947 = vpop.f32.mrf.mxu0
        %v1948 = vadd.f32 %v1910, %v1947
        %v1949 = vand.u32 %v1822, 4294901760
        %v1950 = vsub.f32 %v1822, %v1949
        %1951 = vmatmul.f32.gmra.mxu0 %v1950
        %v1952 = vpop.f32.mrf.mxu0
        %v1953 = vadd.f32 %v1914, %v1952
        %v1954 = vand.u32 %v1825, 4294901760
        %v1955 = vsub.f32 %v1825, %v1954
        %1956 = vmatmul.f32.gmra.mxu0 %v1955
        %v1957 = vpop.f32.mrf.mxu0
        %v1958 = vadd.f32 %v1918, %v1957
        %v1959 = vand.u32 %v1828, 4294901760
        %v1960 = vsub.f32 %v1828, %v1959
        %1961 = vmatmul.f32.gmra.mxu0 %v1960
        %v1962 = vpop.f32.mrf.mxu0
        %v1963 = vadd.f32 %v1922, %v1962
        %1964 = vdwg.mxu0
        %1965 = vmatpush.msra.mxu0 0.0
        %1966 = vmatpush.msra.mxu0 0.0
        %1967 = vmatpush.msra.mxu0 0.0
        %1968 = vmatpush.msra.mxu0 0.0
        %1969 = vmatpush.msra.mxu0 0.0
        %1970 = vmatpush.msra.mxu0 0.0
        %1971 = vmatpush.msra.mxu0 0.0
        %1972 = vmatpush.msra.mxu0 0.0
        %1973 = vmatpush.msra.mxu0 0.0
        %1974 = vmatpush.msra.mxu0 0.0
        %1975 = vmatpush.msra.mxu0 0.0
        %1976 = vmatpush.msra.mxu0 0.0
        %1977 = vmatpush.msra.mxu0 0.0
        %1978 = vmatpush.msra.mxu0 0.0
        %v1979 = vand.u32 %v1812, 4294901760
        %1980 = vmatpush.msra.mxu0 %v1979
        %v1981 = vand.u32 %v1808, 4294901760
        %1982 = vmatpush.msra.mxu0 %v1981
        %v1983 = vand.u32 %v1819, 4294901760
        %v1984 = vsub.f32 %v1819, %v1983
        %v1985 = vand.u32 %v1984, 4294901760
        %1986 = vmatmul.f32.gmra.mxu0 %v1985
        %v1987 = vpop.f32.mrf.mxu0
        %v1988 = vadd.f32 %v1948, %v1987
        %v1989 = vand.u32 %v1822, 4294901760
        %v1990 = vsub.f32 %v1822, %v1989
        %v1991 = vand.u32 %v1990, 4294901760
        %1992 = vmatmul.f32.gmra.mxu0 %v1991
        %v1993 = vpop.f32.mrf.mxu0
        %v1994 = vadd.f32 %v1953, %v1993
        %v1995 = vand.u32 %v1825, 4294901760
        %v1996 = vsub.f32 %v1825, %v1995
        %v1997 = vand.u32 %v1996, 4294901760
        %1998 = vmatmul.f32.gmra.mxu0 %v1997
        %v1999 = vpop.f32.mrf.mxu0
        %v2000 = vadd.f32 %v1958, %v1999
        %v2001 = vand.u32 %v1828, 4294901760
        %v2002 = vsub.f32 %v1828, %v2001
        %v2003 = vand.u32 %v2002, 4294901760
        %2004 = vmatmul.f32.gmra.mxu0 %v2003
        %v2005 = vpop.f32.mrf.mxu0
        %v2006 = vadd.f32 %v1963, %v2005
        %2007 = vdwg.mxu0
        %2008 = vmatpush.msra.mxu0 0.0
        %2009 = vmatpush.msra.mxu0 0.0
        %2010 = vmatpush.msra.mxu0 0.0
        %2011 = vmatpush.msra.mxu0 0.0
        %2012 = vmatpush.msra.mxu0 0.0
        %2013 = vmatpush.msra.mxu0 0.0
        %2014 = vmatpush.msra.mxu0 0.0
        %2015 = vmatpush.msra.mxu0 0.0
        %2016 = vmatpush.msra.mxu0 0.0
        %2017 = vmatpush.msra.mxu0 0.0
        %2018 = vmatpush.msra.mxu0 0.0
        %2019 = vmatpush.msra.mxu0 0.0
        %2020 = vmatpush.msra.mxu0 0.0
        %2021 = vmatpush.msra.mxu0 0.0
        %v2022 = vand.u32 %v1812, 4294901760
        %v2023 = vsub.f32 %v1812, %v2022
        %v2024 = vand.u32 %v2023, 4294901760
        %2025 = vmatpush.msra.mxu0 %v2024
        %v2026 = vand.u32 %v1808, 4294901760
        %v2027 = vsub.f32 %v1808, %v2026
        %v2028 = vand.u32 %v2027, 4294901760
        %2029 = vmatpush.msra.mxu0 %v2028
        %v2030 = vand.u32 %v1819, 4294901760
        %2031 = vmatmul.f32.gmra.mxu0 %v2030
        %v2032 = vpop.f32.mrf.mxu0
        %v2033 = vadd.f32 %v1988, %v2032
        %v2034 = vand.u32 %v1822, 4294901760
        %2035 = vmatmul.f32.gmra.mxu0 %v2034
        %v2036 = vpop.f32.mrf.mxu0
        %v2037 = vadd.f32 %v1994, %v2036
        %v2038 = vand.u32 %v1825, 4294901760
        %2039 = vmatmul.f32.gmra.mxu0 %v2038
        %v2040 = vpop.f32.mrf.mxu0
        %v2041 = vadd.f32 %v2000, %v2040
        %v2042 = vand.u32 %v1828, 4294901760
        %2043 = vmatmul.f32.gmra.mxu0 %v2042
        %v2044 = vpop.f32.mrf.mxu0
        %v2045 = vadd.f32 %v2006, %v2044
        %2046 = vdwg.mxu0
        %2047 = vmatpush.msra.mxu0 0.0
        %2048 = vmatpush.msra.mxu0 0.0
        %2049 = vmatpush.msra.mxu0 0.0
        %2050 = vmatpush.msra.mxu0 0.0
        %2051 = vmatpush.msra.mxu0 0.0
        %2052 = vmatpush.msra.mxu0 0.0
        %2053 = vmatpush.msra.mxu0 0.0
        %2054 = vmatpush.msra.mxu0 0.0
        %2055 = vmatpush.msra.mxu0 0.0
        %2056 = vmatpush.msra.mxu0 0.0
        %2057 = vmatpush.msra.mxu0 0.0
        %2058 = vmatpush.msra.mxu0 0.0
        %2059 = vmatpush.msra.mxu0 0.0
        %2060 = vmatpush.msra.mxu0 0.0
        %v2061 = vand.u32 %v1812, 4294901760
        %2062 = vmatpush.msra.mxu0 %v2061
        %v2063 = vand.u32 %v1808, 4294901760
        %2064 = vmatpush.msra.mxu0 %v2063
        %v2065 = vand.u32 %v1819, 4294901760
        %2066 = vmatmul.f32.gmra.mxu0 %v2065
        %v2067 = vpop.f32.mrf.mxu0
        %v2068 = vadd.f32 %v2033, %v2067
        %v2069 = vand.u32 %v1822, 4294901760
        %2070 = vmatmul.f32.gmra.mxu0 %v2069
        %v2071 = vpop.f32.mrf.mxu0
        %v2072 = vadd.f32 %v2037, %v2071
        %v2073 = vand.u32 %v1825, 4294901760
        %2074 = vmatmul.f32.gmra.mxu0 %v2073
        %v2075 = vpop.f32.mrf.mxu0
        %v2076 = vadd.f32 %v2041, %v2075
        %v2077 = vand.u32 %v1828, 4294901760
        %2078 = vmatmul.f32.gmra.mxu0 %v2077
        %v2079 = vpop.f32.mrf.mxu0
        %v2080 = vadd.f32 %v2045, %v2079
        %2081 = vdwg.mxu0
        %s2082 = scalar_lea.vmem %s190, 96 [#allocation5]
        %2083 = vst.msk [vmem:[%s2082] sm:$0xff] %vm660, %v2068
        %2084 = vst.msk [vmem:[%s2082 + $0x8] sm:$0xff] %vm660, %v2072
        %2085 = vst.msk [vmem:[%s2082 + $0x10] sm:$0xff] %vm660, %v2076
        %2086 = vst.msk [vmem:[%s2082 + $0x18] sm:$0xff] %vm660, %v2080
        %s2087 = sand.u32 %s96, 1
        %s2088 = scalar_lea.sflag [#allocation4], %s2087
        %s2089 = sand.u32 %s96, 1
        %s2090 = smul.addr %s2089, 128
        %s2091 = scalar_lea.vmem [#allocation5], %s2090
        // Predicated region
        $region37: #{skip_forward.1} parent=31 // pred_check
          %p2092 = pneg %p106
        $region38: #{skip_forward.1} parent=31 // pred_check_branch
          %2094 = sbr.rel (%p2092) target = $region40
        $region39: #{skip_forward.1} parent=31 // pred_region
          %2096 = vsyncadd %s2088, 0
          %s2097 = smul.addr %s20, 16
          %s2098 = smul.addr %s2097, 8
          %s2099 = scalar_lea.hbm %s3, %s2098
          %s2100 = sshll.u32 %s2091, 4
          %s2101 = int_to_ptr.vmem [resolvable:$true] %s2100
          %s2102 = sshll.u32 %s2099, 4
          %s2103 = int_to_ptr.hbm [resolvable:$true] %s2102
          %2108 = dma.vmem_to_hbm [thread:$0]  %s2101, 2048, %s2103, %s2088, 128, 128, 8
        $region40: #{skip_forward.1} parent=31 // pred_fallthru
          _
      $region32: #{skip_forward.1} parent=5 // pred_fallthru
        _
      %p2109 = scmp.le.s32.totalorder 2, %s15
      // Predicated region
      $region41: #{skip_forward.1} parent=5 // pred_check
        %p2110 = pneg %p2109
      $region42: #{skip_forward.1} parent=5 // pred_check_branch
        %2112 = sbr.rel (%p2110) target = $region44
      $region43: #{skip_forward.1} parent=5 // pred_region
        %s2113 = ssub.s32 %s15, 2
        // Predicated region
        $region45: #{skip_forward.1} parent=43 // pred_check
          %p2114 = pneg %p112
        $region46: #{skip_forward.1} parent=43 // pred_check_branch
          %2116 = sbr.rel (%p2114) target = $region48
        $region47: #{skip_forward.1} parent=43 // pred_region
          %s2117 = sand.u32 %s97, 1
          %s2118 = scalar_lea.sflag [#allocation4], %s2117
          %s2119 = sand.u32 %s97, 1
          %s2120 = smul.addr %s2119, 128
          %s2121 = scalar_lea.vmem [#allocation5], %s2120
          %2123 = dma.done %s2118, 2048
        $region48: #{skip_forward.1} parent=43 // pred_fallthru
          _
      $region44: #{skip_forward.1} parent=5 // pred_fallthru
        _
    $region6: #{skip_forward.1} parent=1 // loop_footer
      %s19 = sadd.s32 1, %s15
    $region7: #{skip_forward.1} parent=1 // loop_footer_branch
      %14 = sbr.rel target = $region3
    $region8: #{skip_forward.1} parent=1 // loop_exit
      _
    %2124 = vsyncpa [#allocation3], 1
    %s2125 = scalar_lea.sflag [#allocation3], 1
    %2126 = vsyncpa %s2125, 1
    %2127 = vsyncpa [#allocation4], 1
    %s2128 = scalar_lea.sflag [#allocation4], 1
    %2129 = vsyncpa %s2128, 1

</llo_original>
